<compile_context>
chip_gen: v6e
topology: v6e:2x2x1
jax: 0.10.0
libtpu: 0.0.40
codegen_flags: <defaults>
</compile_context>

<pallas_src>
import functools

import jax
import jax.numpy as jnp
from jax.experimental import pallas as pl
from jax.experimental.pallas import tpu as pltpu


def _round_up(x, m):
    return (x + m - 1) // m * m


def _iclassifier_kernel(x_ref, wblk_ref, bcb_ref, wf_ref, bf_ref, out_ref,
                        acc_ref, *, G, C, F, K, TN, THW, HW, LANES, n_hw):
    # x_ref:    [TN*C, THW]  row-tile of x viewed as [N*C, HW] (native NCHW)
    # wblk_ref: [G*F, G*C]   block-diagonal 1x1-conv weight (stationary)
    # bcb_ref:  [G*F, 1]     conv bias, tiled per group row (f32)
    # wf_ref:   [F, K]       fc weight
    # bf_ref:   [1, K]       fc bias (f32)
    # out_ref:  [TN, LANES]  lane-dense slab: lanes [0,F) feats, [F,F+K) c
    # acc_ref:  [TN, F] f32  running spatial sum of ReLU(conv) per instance
    j = pl.program_id(1)

    @pl.when(j == 0)
    def _init():
        acc_ref[...] = jnp.zeros_like(acc_ref)

    wblk = wblk_ref[...]
    bcb = bcb_ref[...]

    # Mask for a partial trailing spatial chunk (only when HW % THW != 0).
    if n_hw > 1 and HW % THW != 0:
        lane = jax.lax.broadcasted_iota(jnp.int32, (1, THW), 1)
        valid = (j * THW + lane) < HW
    else:
        valid = None

    def _group(xg):
        # xg: [G*C, THW] -> one stationary-weight MXU matmul for G instances.
        h = jnp.dot(wblk, xg, preferred_element_type=jnp.float32)   # [G*F, THW]
        h = jnp.maximum(h + bcb, 0.0)                               # bias + ReLU
        if valid is not None:
            h = jnp.where(valid, h, 0.0)
        # Fused spatial partial sum over the lane axis, arranged as [G, F].
        return jnp.sum(h.reshape(G, F, THW), axis=-1)

    n_groups = TN // G
    if n_groups <= 16:
        # Short, static trip count: unroll with static slices.
        for grp in range(n_groups):
            part = _group(x_ref[pl.ds(grp * G * C, G * C), :])
            acc_ref[pl.ds(grp * G, G), :] += part
    else:
        def body(grp, carry):
            r0 = pl.multiple_of(grp * (G * C), G * C)
            part = _group(x_ref[pl.ds(r0, G * C), :])
            a0 = pl.multiple_of(grp * G, G)
            acc_ref[pl.ds(a0, G), :] += part
            return carry
        jax.lax.fori_loop(0, n_groups, body, 0)

    @pl.when(j == n_hw - 1)
    def _finalize():
        feats = acc_ref[...] * (1.0 / float(HW))                    # [TN, F]
        c = jnp.dot(feats, wf_ref[...].astype(jnp.float32),
                    preferred_element_type=jnp.float32) + bf_ref[...]   # [TN, K]
        pad = LANES - F - K
        parts = [feats, c]
        if pad > 0:
            parts.append(jnp.zeros((TN, pad), jnp.float32))
        out_ref[...] = jnp.concatenate(parts, axis=-1).astype(out_ref.dtype)


def _pick_tiles(n, c, hw, f, k, lanes, budget_bytes=12 * 1024 * 1024):
    """Choose (G instances per MXU group, TN instances per row tile, THW
    spatial chunk) so the pipelined working set stays under a conservative
    12 MiB budget (fits v5e's 16 MiB scoped-VMEM default; generous headroom on
    v6e/v7x).  Accounts for the items the old picker omitted."""
    g = 8 if n >= 8 else n
    thw = hw if hw <= 2048 else 2048
    thwp = max(128, _round_up(thw, 128))
    gf = g * f
    fixed_words = (2 * gf * max(128, _round_up(g * c, 128))            # wblk (dbl-buffered)
                   + 2 * gf * 128                                       # bcblk
                   + 2 * _round_up(f, 8) * max(128, _round_up(k, 128))  # wf
                   + 2 * 8 * 128                                        # bf
                   + 2 * gf * thwp)                                     # per-group pre/post-ReLU chunk
    per_row_words = (2 * c * thwp                                       # x rows (dbl-buffered)
                     + 2 * lanes                                        # out slab (dbl-buffered)
                     + max(128, _round_up(f, 128)))                     # acc scratch
    avail_words = budget_bytes // 4 - fixed_words
    tn = max(g, avail_words // per_row_words) if avail_words > 0 else g
    tn = min(tn, 1024, n)
    if n >= 16:
        # Keep at least 2 row steps so both v7x TensorCores get work.
        tn = min(tn, _round_up(pl.cdiv(n, 2), 8))
    if tn >= n and n % g == 0:
        tn = n
    else:
        tn = max(g, (min(tn, n) // g) * g)   # sublane- and group-aligned
    est_bytes = 4 * (fixed_words + tn * per_row_words)
    return g, tn, thw, est_bytes


def iclassifier_forward(x_nchw, wc, bc, wf, bf):
    """x_nchw: [N, C, H, W]. wc: [C, F] 1x1-conv weight, bc: [F] conv bias,
    wf: [F, K] fc weight, bf: [K] fc bias.  Returns (feats [N, F], c [N, K])."""
    N, C, H, W = x_nchw.shape
    HW = H * W
    F = wc.shape[1]
    K = wf.shape[1]
    LANES = max(128, _round_up(F + K, 128))

    G, TN, THW, est_bytes = _pick_tiles(N, C, HW, F, K, LANES)
    n_hw = pl.cdiv(HW, THW)
    grid = (pl.cdiv(N, TN), n_hw)

    # Native NCHW layout; [N, C, HW] -> [N*C, HW] is a free reshape, so the
    # kernel reads x straight from HBM (no extra copy / transpose round trip).
    x2 = x_nchw.reshape(N * C, HW)

    # Block-diagonal stationary conv weight: row (g, f), col (g', c) holds
    # wc[c, f] iff g == g'.  Tiny ((G*F) x (G*C)); built once per call.
    wct = wc.T.astype(x_nchw.dtype)                                   # [F, C]
    eye = jnp.eye(G, dtype=wct.dtype)
    wblk = jnp.einsum('gh,fc->gfhc', eye, wct).reshape(G * F, G * C)
    bcblk = jnp.tile(bc.astype(jnp.float32).reshape(1, F), (G, 1)).reshape(G * F, 1)
    bf2 = bf.astype(jnp.float32).reshape(1, K)

    kernel = functools.partial(
        _iclassifier_kernel, G=G, C=C, F=F, K=K, TN=TN, THW=THW, HW=HW,
        LANES=LANES, n_hw=n_hw)

    slab = pl.pallas_call(
        kernel,
        out_shape=jax.ShapeDtypeStruct((N, LANES), jnp.float32),
        grid=grid,
        in_specs=[
            # Row-tiled / hw-chunked x (double-buffered by the BlockSpec pipeline).
            pl.BlockSpec((TN * C, THW), lambda i, j: (i, j)),
            # Weights / biases stay resident (constant index maps).
            pl.BlockSpec((G * F, G * C), lambda i, j: (0, 0)),
            pl.BlockSpec((G * F, 1), lambda i, j: (0, 0)),
            pl.BlockSpec((F, K), lambda i, j: (0, 0)),
            pl.BlockSpec((1, K), lambda i, j: (0, 0)),
        ],
        out_specs=pl.BlockSpec((TN, LANES), lambda i, j: (i, 0)),
        scratch_shapes=[pltpu.VMEM((TN, F), jnp.float32)],
        compiler_params=pltpu.CompilerParams(
            dimension_semantics=("parallel", "arbitrary"),
            vmem_limit_bytes=int(min(30 << 20, max(16 << 20, est_bytes * 5 // 4)))),
    )(x2, wblk, bcblk, wf, bf2)

    feats = slab[:, :F]
    c = slab[:, F:F + K]
    return feats, c


if __name__ == "__main__":
    # Small shapes consistent with the module:
    #   x: [N=8 instances, C=4, H=16, W=16]; feature_size F=32; output_class K=8.
    N, C, H, W = 8, 4, 16, 16
    F, K = 32, 8

    key = jax.random.PRNGKey(0)
    kx, kwc, kbc, kwf, kbf = jax.random.split(key, 5)

    x = jax.random.normal(kx, (N, C, H, W), dtype=jnp.float32)
    wc = jax.random.normal(kwc, (C, F), dtype=jnp.float32) * 0.1
    bc = jax.random.normal(kbc, (F,), dtype=jnp.float32) * 0.1
    wf = jax.random.normal(kwf, (F, K), dtype=jnp.float32) * 0.1
    bf = jax.random.normal(kbf, (K,), dtype=jnp.float32) * 0.1

    fwd = jax.jit(iclassifier_forward)
    feats, c = fwd(x, wc, bc, wf, bf)
    jax.block_until_ready((feats, c))

    # Pure-JAX reference check (matches the PyTorch forward semantics).
    x_nhwc = jnp.transpose(x, (0, 2, 3, 1)).reshape(N, H * W, C)
    h_ref = jnp.maximum(x_nhwc @ wc + bc, 0.0)
    feats_ref = jnp.mean(h_ref, axis=1)
    c_ref = feats_ref @ wf + bf

    assert feats.shape == (N, F) and c.shape == (N, K)
    assert jnp.allclose(feats, feats_ref, atol=1e-3, rtol=1e-3), \
        float(jnp.max(jnp.abs(feats - feats_ref)))
    assert jnp.allclose(c, c_ref, atol=1e-3, rtol=1e-3), \
        float(jnp.max(jnp.abs(c - c_ref)))

    print("KERNEL_OK")
</pallas_src>

<mosaic_0001>
module attributes {stable_mosaic.version = 11 : i64} {
  func.func @_iclassifier_kernel(%arg0: i32, %arg1: i32, %arg2: memref<32x256xf32, #tpu.memory_space<vmem>>, %arg3: memref<256x32xf32, #tpu.memory_space<vmem>>, %arg4: memref<256x1xf32, #tpu.memory_space<vmem>>, %arg5: memref<32x8xf32, #tpu.memory_space<vmem>>, %arg6: memref<1x8xf32, #tpu.memory_space<vmem>>, %arg7: memref<8x128xf32, #tpu.memory_space<vmem>>, %arg8: memref<8x32xf32, #tpu.memory_space<vmem>>) attributes {dimension_semantics = [#tpu.dimension_semantics<parallel>, #tpu.dimension_semantics<arbitrary>], iteration_bounds = array<i64: 1, 1>, scalar_prefetch = 0 : i64, scratch_operands = 1 : i64, tpu.core_type = #tpu.core_type<tc>, window_params = [{transform_indices = @transform_0, window_bounds = array<i64: 32, 256>}, {pipeline_mode = #tpu.pipeline_mode<synchronous>, transform_indices = @transform_1, window_bounds = array<i64: 256, 32>}, {pipeline_mode = #tpu.pipeline_mode<synchronous>, transform_indices = @transform_2, window_bounds = array<i64: 256, 1>}, {pipeline_mode = #tpu.pipeline_mode<synchronous>, transform_indices = @transform_3, window_bounds = array<i64: 32, 8>}, {pipeline_mode = #tpu.pipeline_mode<synchronous>, transform_indices = @transform_4, window_bounds = array<i64: 1, 8>}, {transform_indices = @transform_5, window_bounds = array<i64: 8, 128>}]} {
    %c0_i32 = arith.constant 0 : i32
    %0 = arith.cmpi eq, %arg1, %c0_i32 : i32
    %1 = arith.extui %0 : i1 to i32
    %c0_i32_0 = arith.constant 0 : i32
    %2 = arith.cmpi ne, %1, %c0_i32_0 : i32
    scf.if %2 {
      %cst_14 = arith.constant 0.000000e+00 : f32
      %19 = vector.broadcast %cst_14 : f32 to vector<8x32xf32>
      %c0_15 = arith.constant 0 : index
      %c0_16 = arith.constant 0 : index
      %20 = vector.load %arg8[%c0_15, %c0_16] : memref<8x32xf32, #tpu.memory_space<vmem>>, vector<8x32xf32>
      tpu.vector_store %arg8[%c0_15, %c0_16], %19 {strides = array<i32>} : memref<8x32xf32, #tpu.memory_space<vmem>>, vector<8x32xf32>,
    } else {
    }
    %c0 = arith.constant 0 : index
    %c0_1 = arith.constant 0 : index
    %3 = vector.load %arg3[%c0, %c0_1] : memref<256x32xf32, #tpu.memory_space<vmem>>, vector<256x32xf32>
    %c0_2 = arith.constant 0 : index
    %c0_3 = arith.constant 0 : index
    %4 = vector.load %arg4[%c0_2, %c0_3] : memref<256x1xf32, #tpu.memory_space<vmem>>, vector<256x1xf32>
    %c0_4 = arith.constant 0 : index
    %c0_5 = arith.constant 0 : index
    %5 = vector.load %arg2[%c0_4, %c0_5] : memref<32x256xf32, #tpu.memory_space<vmem>>, vector<32x256xf32>
    %cst = arith.constant dense<0.000000e+00> : vector<256x256xf32>
    %6 = tpu.matmul %3, %5, %cst {dimension_numbers = #tpu.dot_dimension_numbers<[1], [0], [0], [1], [0, 0, 1, 1], [], []>} : vector<256x32xf32>, vector<32x256xf32>, vector<256x256xf32> -> vector<256x256xf32>
    %7 = vector.broadcast %4 : vector<256x1xf32> to vector<256x256xf32>
    %8 = arith.addf %6, %7 : vector<256x256xf32>
    %cst_6 = arith.constant 0.000000e+00 : f32
    %9 = vector.broadcast %cst_6 : f32 to vector<256x256xf32>
    %10 = arith.maximumf %8, %9 : vector<256x256xf32>
    %11 = vector.shape_cast %10 : vector<256x256xf32> to vector<8x32x256xf32>
    %cst_7 = arith.constant dense<0.000000e+00> : vector<8x32xf32>
    %12 = vector.multi_reduction <add>, %11, %cst_7 [2] : vector<8x32x256xf32> to vector<8x32xf32>
    %c0_8 = arith.constant 0 : index
    %c0_9 = arith.constant 0 : index
    %13 = vector.load %arg8[%c0_8, %c0_9] : memref<8x32xf32, #tpu.memory_space<vmem>>, vector<8x32xf32>
    %14 = arith.addf %13, %12 : vector<8x32xf32>
    %c0_10 = arith.constant 0 : index
    %c0_11 = arith.constant 0 : index
    %15 = vector.load %arg8[%c0_10, %c0_11] : memref<8x32xf32, #tpu.memory_space<vmem>>, vector<8x32xf32>
    tpu.vector_store %arg8[%c0_10, %c0_11], %14 {strides = array<i32>} : memref<8x32xf32, #tpu.memory_space<vmem>>, vector<8x32xf32>,
    %c0_i32_12 = arith.constant 0 : i32
    %16 = arith.cmpi eq, %arg1, %c0_i32_12 : i32
    %17 = arith.extui %16 : i1 to i32
    %c0_i32_13 = arith.constant 0 : i32
    %18 = arith.cmpi ne, %17, %c0_i32_13 : i32
    scf.if %18 {
      %c0_14 = arith.constant 0 : index
      %c0_15 = arith.constant 0 : index
      %19 = vector.load %arg8[%c0_14, %c0_15] : memref<8x32xf32, #tpu.memory_space<vmem>>, vector<8x32xf32>
      %cst_16 = arith.constant 3.906250e-03 : f32
      %20 = vector.broadcast %cst_16 : f32 to vector<8x32xf32>
      %21 = arith.mulf %19, %20 : vector<8x32xf32>
      %c0_17 = arith.constant 0 : index
      %c0_18 = arith.constant 0 : index
      %22 = vector.load %arg5[%c0_17, %c0_18] : memref<32x8xf32, #tpu.memory_space<vmem>>, vector<32x8xf32>
      %cst_19 = arith.constant dense<0.000000e+00> : vector<8x8xf32>
      %23 = tpu.matmul %21, %22, %cst_19 {dimension_numbers = #tpu.dot_dimension_numbers<[1], [0], [0], [1], [0, 0, 1, 1], [], []>} : vector<8x32xf32>, vector<32x8xf32>, vector<8x8xf32> -> vector<8x8xf32>
      %c0_20 = arith.constant 0 : index
      %c0_21 = arith.constant 0 : index
      %24 = vector.load %arg6[%c0_20, %c0_21] : memref<1x8xf32, #tpu.memory_space<vmem>>, vector<1x8xf32>
      %25 = vector.broadcast %24 : vector<1x8xf32> to vector<8x8xf32>
      %26 = arith.addf %23, %25 : vector<8x8xf32>
      %cst_22 = arith.constant 0.000000e+00 : f32
      %27 = vector.broadcast %cst_22 : f32 to vector<8x88xf32>
      %28 = tpu.concatenate %21, %26, %27 in 1 : vector<8x32xf32>, vector<8x8xf32>, vector<8x88xf32> -> vector<8x128xf32>
      %c0_23 = arith.constant 0 : index
      %c0_24 = arith.constant 0 : index
      %29 = vector.load %arg7[%c0_23, %c0_24] : memref<8x128xf32, #tpu.memory_space<vmem>>, vector<8x128xf32>
      tpu.vector_store %arg7[%c0_23, %c0_24], %28 {strides = array<i32>} : memref<8x128xf32, #tpu.memory_space<vmem>>, vector<8x128xf32>,
    } else {
    }
    return
  }
  func.func @transform_0(%arg0: i32, %arg1: i32) -> (i32, i32) {
    %c0_i32 = arith.constant 0 : i32
    return %arg0, %arg1 : i32, i32
  }
  func.func @transform_1(%arg0: i32, %arg1: i32) -> (i32, i32) {
    %c0_i32 = arith.constant 0 : i32
    %c0_i32_0 = arith.constant 0 : i32
    %c0_i32_1 = arith.constant 0 : i32
    return %c0_i32, %c0_i32_0 : i32, i32
  }
  func.func @transform_2(%arg0: i32, %arg1: i32) -> (i32, i32) {
    %c0_i32 = arith.constant 0 : i32
    %c0_i32_0 = arith.constant 0 : i32
    %c0_i32_1 = arith.constant 0 : i32
    return %c0_i32, %c0_i32_0 : i32, i32
  }
  func.func @transform_3(%arg0: i32, %arg1: i32) -> (i32, i32) {
    %c0_i32 = arith.constant 0 : i32
    %c0_i32_0 = arith.constant 0 : i32
    %c0_i32_1 = arith.constant 0 : i32
    return %c0_i32, %c0_i32_0 : i32, i32
  }
  func.func @transform_4(%arg0: i32, %arg1: i32) -> (i32, i32) {
    %c0_i32 = arith.constant 0 : i32
    %c0_i32_0 = arith.constant 0 : i32
    %c0_i32_1 = arith.constant 0 : i32
    return %c0_i32, %c0_i32_0 : i32, i32
  }
  func.func @transform_5(%arg0: i32, %arg1: i32) -> (i32, i32) {
    %c0_i32 = arith.constant 0 : i32
    %c0_i32_0 = arith.constant 0 : i32
    return %arg0, %c0_i32 : i32, i32
  }
}

</mosaic_0001>

<llo_original>
// kernel: tile.6
$region0: #{tile.6}
  #allocation0 [shape = 's32[1]{0}', space=sflag, size = 0x4, scoped, tag = 'scoped memory for tile.6']
  %s0 = inlined_call_operand.vmem [shape: f32[32], index: 0, kind: input, shape index: {}]
  %s1 = inlined_call_operand.vmem [shape: f32[8,1,1,32], index: 1, kind: output, shape index: {}]
  // Predicated region
  $region2: #{tile.6} parent=0 // pred_check
    _
  $region3: #{tile.6} parent=0 // pred_check_branch
    %3 = sbr.rel (0) target = $region5
  $region4: #{tile.6} parent=0 // pred_region
    _
  $region5: #{tile.6} parent=0 // pred_fallthru
    _
  %v4 = vld [vmem:[%s0] ss:$0 sm:$0xff]
  %5 = vst [vmem:[%s1] sm:$0xff] %v4

// kernel: tile.0
$region0: #{tile.0}
  %s0 = inlined_call_operand.vmem [shape: f32[8,1,1,32], index: 0, kind: input, shape index: {}]
  %s1 = inlined_call_operand.vmem [shape: f32[256,1], index: 1, kind: output, shape index: {}]
  %v2 = vld [vmem:[%s0] sm:$0xff]
  %vm3 = vcmask 7168
  %4 = vst.msk [vmem:[%s1] sm:$0x1] %vm3, %v2
  %s5 = scalar_lea.vmem %s1, 31
  %6 = vst.msk [vmem:[%s5] sm:$0x2] %vm3, %v2
  %s7 = scalar_lea.vmem %s1, 62
  %8 = vst.msk [vmem:[%s7] sm:$0x4] %vm3, %v2
  %s9 = scalar_lea.vmem %s1, 93
  %10 = vst.msk [vmem:[%s9] sm:$0x8] %vm3, %v2
  %s11 = scalar_lea.vmem %s1, 124
  %12 = vst.msk [vmem:[%s11] sm:$0x10] %vm3, %v2
  %s13 = scalar_lea.vmem %s1, 155
  %14 = vst.msk [vmem:[%s13] sm:$0x20] %vm3, %v2
  %s15 = scalar_lea.vmem %s1, 186
  %16 = vst.msk [vmem:[%s15] sm:$0x40] %vm3, %v2
  %s17 = scalar_lea.vmem %s1, 217
  %18 = vst.msk [vmem:[%s17] sm:$0x80] %vm3, %v2
  %v19 = vld [vmem:[%s0] sm:$0xff]
  %20 = vrot.lane.b32.xlu0 %v19, 127
  %v21 = vpop.permute.xlu0 %20
  %vm22 = vcmask 7168
  %s23 = scalar_lea.vmem %s1, 1
  %24 = vst.msk [vmem:[%s23] sm:$0x1] %vm22, %v21
  %s25 = scalar_lea.vmem %s1, 32
  %26 = vst.msk [vmem:[%s25] sm:$0x2] %vm22, %v21
  %s27 = scalar_lea.vmem %s1, 63
  %28 = vst.msk [vmem:[%s27] sm:$0x4] %vm22, %v21
  %s29 = scalar_lea.vmem %s1, 94
  %30 = vst.msk [vmem:[%s29] sm:$0x8] %vm22, %v21
  %s31 = scalar_lea.vmem %s1, 125
  %32 = vst.msk [vmem:[%s31] sm:$0x10] %vm22, %v21
  %s33 = scalar_lea.vmem %s1, 156
  %34 = vst.msk [vmem:[%s33] sm:$0x20] %vm22, %v21
  %s35 = scalar_lea.vmem %s1, 187
  %36 = vst.msk [vmem:[%s35] sm:$0x40] %vm22, %v21
  %s37 = scalar_lea.vmem %s1, 218
  %38 = vst.msk [vmem:[%s37] sm:$0x80] %vm22, %v21
  %v39 = vld [vmem:[%s0] sm:$0xff]
  %40 = vrot.lane.b32.xlu0 %v39, 126
  %v41 = vpop.permute.xlu0 %40
  %vm42 = vcmask 7168
  %s43 = scalar_lea.vmem %s1, 2
  %44 = vst.msk [vmem:[%s43] sm:$0x1] %vm42, %v41
  %s45 = scalar_lea.vmem %s1, 33
  %46 = vst.msk [vmem:[%s45] sm:$0x2] %vm42, %v41
  %s47 = scalar_lea.vmem %s1, 64
  %48 = vst.msk [vmem:[%s47] sm:$0x4] %vm42, %v41
  %s49 = scalar_lea.vmem %s1, 95
  %50 = vst.msk [vmem:[%s49] sm:$0x8] %vm42, %v41
  %s51 = scalar_lea.vmem %s1, 126
  %52 = vst.msk [vmem:[%s51] sm:$0x10] %vm42, %v41
  %s53 = scalar_lea.vmem %s1, 157
  %54 = vst.msk [vmem:[%s53] sm:$0x20] %vm42, %v41
  %s55 = scalar_lea.vmem %s1, 188
  %56 = vst.msk [vmem:[%s55] sm:$0x40] %vm42, %v41
  %s57 = scalar_lea.vmem %s1, 219
  %58 = vst.msk [vmem:[%s57] sm:$0x80] %vm42, %v41
  %v59 = vld [vmem:[%s0] sm:$0xff]
  %60 = vrot.lane.b32.xlu0 %v59, 125
  %v61 = vpop.permute.xlu0 %60
  %vm62 = vcmask 7168
  %s63 = scalar_lea.vmem %s1, 3
  %64 = vst.msk [vmem:[%s63] sm:$0x1] %vm62, %v61
  %s65 = scalar_lea.vmem %s1, 34
  %66 = vst.msk [vmem:[%s65] sm:$0x2] %vm62, %v61
  %s67 = scalar_lea.vmem %s1, 65
  %68 = vst.msk [vmem:[%s67] sm:$0x4] %vm62, %v61
  %s69 = scalar_lea.vmem %s1, 96
  %70 = vst.msk [vmem:[%s69] sm:$0x8] %vm62, %v61
  %s71 = scalar_lea.vmem %s1, 127
  %72 = vst.msk [vmem:[%s71] sm:$0x10] %vm62, %v61
  %s73 = scalar_lea.vmem %s1, 158
  %74 = vst.msk [vmem:[%s73] sm:$0x20] %vm62, %v61
  %s75 = scalar_lea.vmem %s1, 189
  %76 = vst.msk [vmem:[%s75] sm:$0x40] %vm62, %v61
  %s77 = scalar_lea.vmem %s1, 220
  %78 = vst.msk [vmem:[%s77] sm:$0x80] %vm62, %v61
  %v79 = vld [vmem:[%s0] sm:$0xff]
  %80 = vrot.lane.b32.xlu0 %v79, 124
  %v81 = vpop.permute.xlu0 %80
  %vm82 = vcmask 7168
  %s83 = scalar_lea.vmem %s1, 4
  %84 = vst.msk [vmem:[%s83] sm:$0x1] %vm82, %v81
  %s85 = scalar_lea.vmem %s1, 35
  %86 = vst.msk [vmem:[%s85] sm:$0x2] %vm82, %v81
  %s87 = scalar_lea.vmem %s1, 66
  %88 = vst.msk [vmem:[%s87] sm:$0x4] %vm82, %v81
  %s89 = scalar_lea.vmem %s1, 97
  %90 = vst.msk [vmem:[%s89] sm:$0x8] %vm82, %v81
  %s91 = scalar_lea.vmem %s1, 128
  %92 = vst.msk [vmem:[%s91] sm:$0x10] %vm82, %v81
  %s93 = scalar_lea.vmem %s1, 159
  %94 = vst.msk [vmem:[%s93] sm:$0x20] %vm82, %v81
  %s95 = scalar_lea.vmem %s1, 190
  %96 = vst.msk [vmem:[%s95] sm:$0x40] %vm82, %v81
  %s97 = scalar_lea.vmem %s1, 221
  %98 = vst.msk [vmem:[%s97] sm:$0x80] %vm82, %v81
  %v99 = vld [vmem:[%s0] sm:$0xff]
  %100 = vrot.lane.b32.xlu0 %v99, 123
  %v101 = vpop.permute.xlu0 %100
  %vm102 = vcmask 7168
  %s103 = scalar_lea.vmem %s1, 5
  %104 = vst.msk [vmem:[%s103] sm:$0x1] %vm102, %v101
  %s105 = scalar_lea.vmem %s1, 36
  %106 = vst.msk [vmem:[%s105] sm:$0x2] %vm102, %v101
  %s107 = scalar_lea.vmem %s1, 67
  %108 = vst.msk [vmem:[%s107] sm:$0x4] %vm102, %v101
  %s109 = scalar_lea.vmem %s1, 98
  %110 = vst.msk [vmem:[%s109] sm:$0x8] %vm102, %v101
  %s111 = scalar_lea.vmem %s1, 129
  %112 = vst.msk [vmem:[%s111] sm:$0x10] %vm102, %v101
  %s113 = scalar_lea.vmem %s1, 160
  %114 = vst.msk [vmem:[%s113] sm:$0x20] %vm102, %v101
  %s115 = scalar_lea.vmem %s1, 191
  %116 = vst.msk [vmem:[%s115] sm:$0x40] %vm102, %v101
  %s117 = scalar_lea.vmem %s1, 222
  %118 = vst.msk [vmem:[%s117] sm:$0x80] %vm102, %v101
  %v119 = vld [vmem:[%s0] sm:$0xff]
  %120 = vrot.lane.b32.xlu0 %v119, 122
  %v121 = vpop.permute.xlu0 %120
  %vm122 = vcmask 7168
  %s123 = scalar_lea.vmem %s1, 6
  %124 = vst.msk [vmem:[%s123] sm:$0x1] %vm122, %v121
  %s125 = scalar_lea.vmem %s1, 37
  %126 = vst.msk [vmem:[%s125] sm:$0x2] %vm122, %v121
  %s127 = scalar_lea.vmem %s1, 68
  %128 = vst.msk [vmem:[%s127] sm:$0x4] %vm122, %v121
  %s129 = scalar_lea.vmem %s1, 99
  %130 = vst.msk [vmem:[%s129] sm:$0x8] %vm122, %v121
  %s131 = scalar_lea.vmem %s1, 130
  %132 = vst.msk [vmem:[%s131] sm:$0x10] %vm122, %v121
  %s133 = scalar_lea.vmem %s1, 161
  %134 = vst.msk [vmem:[%s133] sm:$0x20] %vm122, %v121
  %s135 = scalar_lea.vmem %s1, 192
  %136 = vst.msk [vmem:[%s135] sm:$0x40] %vm122, %v121
  %s137 = scalar_lea.vmem %s1, 223
  %138 = vst.msk [vmem:[%s137] sm:$0x80] %vm122, %v121
  %v139 = vld [vmem:[%s0] sm:$0xff]
  %140 = vrot.lane.b32.xlu0 %v139, 121
  %v141 = vpop.permute.xlu0 %140
  %vm142 = vcmask 7168
  %s143 = scalar_lea.vmem %s1, 7
  %144 = vst.msk [vmem:[%s143] sm:$0x1] %vm142, %v141
  %s145 = scalar_lea.vmem %s1, 38
  %146 = vst.msk [vmem:[%s145] sm:$0x2] %vm142, %v141
  %s147 = scalar_lea.vmem %s1, 69
  %148 = vst.msk [vmem:[%s147] sm:$0x4] %vm142, %v141
  %s149 = scalar_lea.vmem %s1, 100
  %150 = vst.msk [vmem:[%s149] sm:$0x8] %vm142, %v141
  %s151 = scalar_lea.vmem %s1, 131
  %152 = vst.msk [vmem:[%s151] sm:$0x10] %vm142, %v141
  %s153 = scalar_lea.vmem %s1, 162
  %154 = vst.msk [vmem:[%s153] sm:$0x20] %vm142, %v141
  %s155 = scalar_lea.vmem %s1, 193
  %156 = vst.msk [vmem:[%s155] sm:$0x40] %vm142, %v141
  %s157 = scalar_lea.vmem %s1, 224
  %158 = vst.msk [vmem:[%s157] sm:$0x80] %vm142, %v141
  %v159 = vld [vmem:[%s0] sm:$0xff]
  %160 = vrot.lane.b32.xlu0 %v159, 120
  %v161 = vpop.permute.xlu0 %160
  %vm162 = vcmask 7168
  %s163 = scalar_lea.vmem %s1, 8
  %164 = vst.msk [vmem:[%s163] sm:$0x1] %vm162, %v161
  %s165 = scalar_lea.vmem %s1, 39
  %166 = vst.msk [vmem:[%s165] sm:$0x2] %vm162, %v161
  %s167 = scalar_lea.vmem %s1, 70
  %168 = vst.msk [vmem:[%s167] sm:$0x4] %vm162, %v161
  %s169 = scalar_lea.vmem %s1, 101
  %170 = vst.msk [vmem:[%s169] sm:$0x8] %vm162, %v161
  %s171 = scalar_lea.vmem %s1, 132
  %172 = vst.msk [vmem:[%s171] sm:$0x10] %vm162, %v161
  %s173 = scalar_lea.vmem %s1, 163
  %174 = vst.msk [vmem:[%s173] sm:$0x20] %vm162, %v161
  %s175 = scalar_lea.vmem %s1, 194
  %176 = vst.msk [vmem:[%s175] sm:$0x40] %vm162, %v161
  %s177 = scalar_lea.vmem %s1, 225
  %178 = vst.msk [vmem:[%s177] sm:$0x80] %vm162, %v161
  %v179 = vld [vmem:[%s0] sm:$0xff]
  %180 = vrot.lane.b32.xlu0 %v179, 119
  %v181 = vpop.permute.xlu0 %180
  %vm182 = vcmask 7168
  %s183 = scalar_lea.vmem %s1, 9
  %184 = vst.msk [vmem:[%s183] sm:$0x1] %vm182, %v181
  %s185 = scalar_lea.vmem %s1, 40
  %186 = vst.msk [vmem:[%s185] sm:$0x2] %vm182, %v181
  %s187 = scalar_lea.vmem %s1, 71
  %188 = vst.msk [vmem:[%s187] sm:$0x4] %vm182, %v181
  %s189 = scalar_lea.vmem %s1, 102
  %190 = vst.msk [vmem:[%s189] sm:$0x8] %vm182, %v181
  %s191 = scalar_lea.vmem %s1, 133
  %192 = vst.msk [vmem:[%s191] sm:$0x10] %vm182, %v181
  %s193 = scalar_lea.vmem %s1, 164
  %194 = vst.msk [vmem:[%s193] sm:$0x20] %vm182, %v181
  %s195 = scalar_lea.vmem %s1, 195
  %196 = vst.msk [vmem:[%s195] sm:$0x40] %vm182, %v181
  %s197 = scalar_lea.vmem %s1, 226
  %198 = vst.msk [vmem:[%s197] sm:$0x80] %vm182, %v181
  %v199 = vld [vmem:[%s0] sm:$0xff]
  %200 = vrot.lane.b32.xlu0 %v199, 118
  %v201 = vpop.permute.xlu0 %200
  %vm202 = vcmask 7168
  %s203 = scalar_lea.vmem %s1, 10
  %204 = vst.msk [vmem:[%s203] sm:$0x1] %vm202, %v201
  %s205 = scalar_lea.vmem %s1, 41
  %206 = vst.msk [vmem:[%s205] sm:$0x2] %vm202, %v201
  %s207 = scalar_lea.vmem %s1, 72
  %208 = vst.msk [vmem:[%s207] sm:$0x4] %vm202, %v201
  %s209 = scalar_lea.vmem %s1, 103
  %210 = vst.msk [vmem:[%s209] sm:$0x8] %vm202, %v201
  %s211 = scalar_lea.vmem %s1, 134
  %212 = vst.msk [vmem:[%s211] sm:$0x10] %vm202, %v201
  %s213 = scalar_lea.vmem %s1, 165
  %214 = vst.msk [vmem:[%s213] sm:$0x20] %vm202, %v201
  %s215 = scalar_lea.vmem %s1, 196
  %216 = vst.msk [vmem:[%s215] sm:$0x40] %vm202, %v201
  %s217 = scalar_lea.vmem %s1, 227
  %218 = vst.msk [vmem:[%s217] sm:$0x80] %vm202, %v201
  %v219 = vld [vmem:[%s0] sm:$0xff]
  %220 = vrot.lane.b32.xlu0 %v219, 117
  %v221 = vpop.permute.xlu0 %220
  %vm222 = vcmask 7168
  %s223 = scalar_lea.vmem %s1, 11
  %224 = vst.msk [vmem:[%s223] sm:$0x1] %vm222, %v221
  %s225 = scalar_lea.vmem %s1, 42
  %226 = vst.msk [vmem:[%s225] sm:$0x2] %vm222, %v221
  %s227 = scalar_lea.vmem %s1, 73
  %228 = vst.msk [vmem:[%s227] sm:$0x4] %vm222, %v221
  %s229 = scalar_lea.vmem %s1, 104
  %230 = vst.msk [vmem:[%s229] sm:$0x8] %vm222, %v221
  %s231 = scalar_lea.vmem %s1, 135
  %232 = vst.msk [vmem:[%s231] sm:$0x10] %vm222, %v221
  %s233 = scalar_lea.vmem %s1, 166
  %234 = vst.msk [vmem:[%s233] sm:$0x20] %vm222, %v221
  %s235 = scalar_lea.vmem %s1, 197
  %236 = vst.msk [vmem:[%s235] sm:$0x40] %vm222, %v221
  %s237 = scalar_lea.vmem %s1, 228
  %238 = vst.msk [vmem:[%s237] sm:$0x80] %vm222, %v221
  %v239 = vld [vmem:[%s0] sm:$0xff]
  %240 = vrot.lane.b32.xlu0 %v239, 116
  %v241 = vpop.permute.xlu0 %240
  %vm242 = vcmask 7168
  %s243 = scalar_lea.vmem %s1, 12
  %244 = vst.msk [vmem:[%s243] sm:$0x1] %vm242, %v241
  %s245 = scalar_lea.vmem %s1, 43
  %246 = vst.msk [vmem:[%s245] sm:$0x2] %vm242, %v241
  %s247 = scalar_lea.vmem %s1, 74
  %248 = vst.msk [vmem:[%s247] sm:$0x4] %vm242, %v241
  %s249 = scalar_lea.vmem %s1, 105
  %250 = vst.msk [vmem:[%s249] sm:$0x8] %vm242, %v241
  %s251 = scalar_lea.vmem %s1, 136
  %252 = vst.msk [vmem:[%s251] sm:$0x10] %vm242, %v241
  %s253 = scalar_lea.vmem %s1, 167
  %254 = vst.msk [vmem:[%s253] sm:$0x20] %vm242, %v241
  %s255 = scalar_lea.vmem %s1, 198
  %256 = vst.msk [vmem:[%s255] sm:$0x40] %vm242, %v241
  %s257 = scalar_lea.vmem %s1, 229
  %258 = vst.msk [vmem:[%s257] sm:$0x80] %vm242, %v241
  %v259 = vld [vmem:[%s0] sm:$0xff]
  %260 = vrot.lane.b32.xlu0 %v259, 115
  %v261 = vpop.permute.xlu0 %260
  %vm262 = vcmask 7168
  %s263 = scalar_lea.vmem %s1, 13
  %264 = vst.msk [vmem:[%s263] sm:$0x1] %vm262, %v261
  %s265 = scalar_lea.vmem %s1, 44
  %266 = vst.msk [vmem:[%s265] sm:$0x2] %vm262, %v261
  %s267 = scalar_lea.vmem %s1, 75
  %268 = vst.msk [vmem:[%s267] sm:$0x4] %vm262, %v261
  %s269 = scalar_lea.vmem %s1, 106
  %270 = vst.msk [vmem:[%s269] sm:$0x8] %vm262, %v261
  %s271 = scalar_lea.vmem %s1, 137
  %272 = vst.msk [vmem:[%s271] sm:$0x10] %vm262, %v261
  %s273 = scalar_lea.vmem %s1, 168
  %274 = vst.msk [vmem:[%s273] sm:$0x20] %vm262, %v261
  %s275 = scalar_lea.vmem %s1, 199
  %276 = vst.msk [vmem:[%s275] sm:$0x40] %vm262, %v261
  %s277 = scalar_lea.vmem %s1, 230
  %278 = vst.msk [vmem:[%s277] sm:$0x80] %vm262, %v261
  %v279 = vld [vmem:[%s0] sm:$0xff]
  %280 = vrot.lane.b32.xlu0 %v279, 114
  %v281 = vpop.permute.xlu0 %280
  %vm282 = vcmask 7168
  %s283 = scalar_lea.vmem %s1, 14
  %284 = vst.msk [vmem:[%s283] sm:$0x1] %vm282, %v281
  %s285 = scalar_lea.vmem %s1, 45
  %286 = vst.msk [vmem:[%s285] sm:$0x2] %vm282, %v281
  %s287 = scalar_lea.vmem %s1, 76
  %288 = vst.msk [vmem:[%s287] sm:$0x4] %vm282, %v281
  %s289 = scalar_lea.vmem %s1, 107
  %290 = vst.msk [vmem:[%s289] sm:$0x8] %vm282, %v281
  %s291 = scalar_lea.vmem %s1, 138
  %292 = vst.msk [vmem:[%s291] sm:$0x10] %vm282, %v281
  %s293 = scalar_lea.vmem %s1, 169
  %294 = vst.msk [vmem:[%s293] sm:$0x20] %vm282, %v281
  %s295 = scalar_lea.vmem %s1, 200
  %296 = vst.msk [vmem:[%s295] sm:$0x40] %vm282, %v281
  %s297 = scalar_lea.vmem %s1, 231
  %298 = vst.msk [vmem:[%s297] sm:$0x80] %vm282, %v281
  %v299 = vld [vmem:[%s0] sm:$0xff]
  %300 = vrot.lane.b32.xlu0 %v299, 113
  %v301 = vpop.permute.xlu0 %300
  %vm302 = vcmask 7168
  %s303 = scalar_lea.vmem %s1, 15
  %304 = vst.msk [vmem:[%s303] sm:$0x1] %vm302, %v301
  %s305 = scalar_lea.vmem %s1, 46
  %306 = vst.msk [vmem:[%s305] sm:$0x2] %vm302, %v301
  %s307 = scalar_lea.vmem %s1, 77
  %308 = vst.msk [vmem:[%s307] sm:$0x4] %vm302, %v301
  %s309 = scalar_lea.vmem %s1, 108
  %310 = vst.msk [vmem:[%s309] sm:$0x8] %vm302, %v301
  %s311 = scalar_lea.vmem %s1, 139
  %312 = vst.msk [vmem:[%s311] sm:$0x10] %vm302, %v301
  %s313 = scalar_lea.vmem %s1, 170
  %314 = vst.msk [vmem:[%s313] sm:$0x20] %vm302, %v301
  %s315 = scalar_lea.vmem %s1, 201
  %316 = vst.msk [vmem:[%s315] sm:$0x40] %vm302, %v301
  %s317 = scalar_lea.vmem %s1, 232
  %318 = vst.msk [vmem:[%s317] sm:$0x80] %vm302, %v301
  %v319 = vld [vmem:[%s0] sm:$0xff]
  %320 = vrot.lane.b32.xlu0 %v319, 112
  %v321 = vpop.permute.xlu0 %320
  %vm322 = vcmask 7168
  %s323 = scalar_lea.vmem %s1, 16
  %324 = vst.msk [vmem:[%s323] sm:$0x1] %vm322, %v321
  %s325 = scalar_lea.vmem %s1, 47
  %326 = vst.msk [vmem:[%s325] sm:$0x2] %vm322, %v321
  %s327 = scalar_lea.vmem %s1, 78
  %328 = vst.msk [vmem:[%s327] sm:$0x4] %vm322, %v321
  %s329 = scalar_lea.vmem %s1, 109
  %330 = vst.msk [vmem:[%s329] sm:$0x8] %vm322, %v321
  %s331 = scalar_lea.vmem %s1, 140
  %332 = vst.msk [vmem:[%s331] sm:$0x10] %vm322, %v321
  %s333 = scalar_lea.vmem %s1, 171
  %334 = vst.msk [vmem:[%s333] sm:$0x20] %vm322, %v321
  %s335 = scalar_lea.vmem %s1, 202
  %336 = vst.msk [vmem:[%s335] sm:$0x40] %vm322, %v321
  %s337 = scalar_lea.vmem %s1, 233
  %338 = vst.msk [vmem:[%s337] sm:$0x80] %vm322, %v321
  %v339 = vld [vmem:[%s0] sm:$0xff]
  %340 = vrot.lane.b32.xlu0 %v339, 111
  %v341 = vpop.permute.xlu0 %340
  %vm342 = vcmask 7168
  %s343 = scalar_lea.vmem %s1, 17
  %344 = vst.msk [vmem:[%s343] sm:$0x1] %vm342, %v341
  %s345 = scalar_lea.vmem %s1, 48
  %346 = vst.msk [vmem:[%s345] sm:$0x2] %vm342, %v341
  %s347 = scalar_lea.vmem %s1, 79
  %348 = vst.msk [vmem:[%s347] sm:$0x4] %vm342, %v341
  %s349 = scalar_lea.vmem %s1, 110
  %350 = vst.msk [vmem:[%s349] sm:$0x8] %vm342, %v341
  %s351 = scalar_lea.vmem %s1, 141
  %352 = vst.msk [vmem:[%s351] sm:$0x10] %vm342, %v341
  %s353 = scalar_lea.vmem %s1, 172
  %354 = vst.msk [vmem:[%s353] sm:$0x20] %vm342, %v341
  %s355 = scalar_lea.vmem %s1, 203
  %356 = vst.msk [vmem:[%s355] sm:$0x40] %vm342, %v341
  %s357 = scalar_lea.vmem %s1, 234
  %358 = vst.msk [vmem:[%s357] sm:$0x80] %vm342, %v341
  %v359 = vld [vmem:[%s0] sm:$0xff]
  %360 = vrot.lane.b32.xlu0 %v359, 110
  %v361 = vpop.permute.xlu0 %360
  %vm362 = vcmask 7168
  %s363 = scalar_lea.vmem %s1, 18
  %364 = vst.msk [vmem:[%s363] sm:$0x1] %vm362, %v361
  %s365 = scalar_lea.vmem %s1, 49
  %366 = vst.msk [vmem:[%s365] sm:$0x2] %vm362, %v361
  %s367 = scalar_lea.vmem %s1, 80
  %368 = vst.msk [vmem:[%s367] sm:$0x4] %vm362, %v361
  %s369 = scalar_lea.vmem %s1, 111
  %370 = vst.msk [vmem:[%s369] sm:$0x8] %vm362, %v361
  %s371 = scalar_lea.vmem %s1, 142
  %372 = vst.msk [vmem:[%s371] sm:$0x10] %vm362, %v361
  %s373 = scalar_lea.vmem %s1, 173
  %374 = vst.msk [vmem:[%s373] sm:$0x20] %vm362, %v361
  %s375 = scalar_lea.vmem %s1, 204
  %376 = vst.msk [vmem:[%s375] sm:$0x40] %vm362, %v361
  %s377 = scalar_lea.vmem %s1, 235
  %378 = vst.msk [vmem:[%s377] sm:$0x80] %vm362, %v361
  %v379 = vld [vmem:[%s0] sm:$0xff]
  %380 = vrot.lane.b32.xlu0 %v379, 109
  %v381 = vpop.permute.xlu0 %380
  %vm382 = vcmask 7168
  %s383 = scalar_lea.vmem %s1, 19
  %384 = vst.msk [vmem:[%s383] sm:$0x1] %vm382, %v381
  %s385 = scalar_lea.vmem %s1, 50
  %386 = vst.msk [vmem:[%s385] sm:$0x2] %vm382, %v381
  %s387 = scalar_lea.vmem %s1, 81
  %388 = vst.msk [vmem:[%s387] sm:$0x4] %vm382, %v381
  %s389 = scalar_lea.vmem %s1, 112
  %390 = vst.msk [vmem:[%s389] sm:$0x8] %vm382, %v381
  %s391 = scalar_lea.vmem %s1, 143
  %392 = vst.msk [vmem:[%s391] sm:$0x10] %vm382, %v381
  %s393 = scalar_lea.vmem %s1, 174
  %394 = vst.msk [vmem:[%s393] sm:$0x20] %vm382, %v381
  %s395 = scalar_lea.vmem %s1, 205
  %396 = vst.msk [vmem:[%s395] sm:$0x40] %vm382, %v381
  %s397 = scalar_lea.vmem %s1, 236
  %398 = vst.msk [vmem:[%s397] sm:$0x80] %vm382, %v381
  %v399 = vld [vmem:[%s0] sm:$0xff]
  %400 = vrot.lane.b32.xlu0 %v399, 108
  %v401 = vpop.permute.xlu0 %400
  %vm402 = vcmask 7168
  %s403 = scalar_lea.vmem %s1, 20
  %404 = vst.msk [vmem:[%s403] sm:$0x1] %vm402, %v401
  %s405 = scalar_lea.vmem %s1, 51
  %406 = vst.msk [vmem:[%s405] sm:$0x2] %vm402, %v401
  %s407 = scalar_lea.vmem %s1, 82
  %408 = vst.msk [vmem:[%s407] sm:$0x4] %vm402, %v401
  %s409 = scalar_lea.vmem %s1, 113
  %410 = vst.msk [vmem:[%s409] sm:$0x8] %vm402, %v401
  %s411 = scalar_lea.vmem %s1, 144
  %412 = vst.msk [vmem:[%s411] sm:$0x10] %vm402, %v401
  %s413 = scalar_lea.vmem %s1, 175
  %414 = vst.msk [vmem:[%s413] sm:$0x20] %vm402, %v401
  %s415 = scalar_lea.vmem %s1, 206
  %416 = vst.msk [vmem:[%s415] sm:$0x40] %vm402, %v401
  %s417 = scalar_lea.vmem %s1, 237
  %418 = vst.msk [vmem:[%s417] sm:$0x80] %vm402, %v401
  %v419 = vld [vmem:[%s0] sm:$0xff]
  %420 = vrot.lane.b32.xlu0 %v419, 107
  %v421 = vpop.permute.xlu0 %420
  %vm422 = vcmask 7168
  %s423 = scalar_lea.vmem %s1, 21
  %424 = vst.msk [vmem:[%s423] sm:$0x1] %vm422, %v421
  %s425 = scalar_lea.vmem %s1, 52
  %426 = vst.msk [vmem:[%s425] sm:$0x2] %vm422, %v421
  %s427 = scalar_lea.vmem %s1, 83
  %428 = vst.msk [vmem:[%s427] sm:$0x4] %vm422, %v421
  %s429 = scalar_lea.vmem %s1, 114
  %430 = vst.msk [vmem:[%s429] sm:$0x8] %vm422, %v421
  %s431 = scalar_lea.vmem %s1, 145
  %432 = vst.msk [vmem:[%s431] sm:$0x10] %vm422, %v421
  %s433 = scalar_lea.vmem %s1, 176
  %434 = vst.msk [vmem:[%s433] sm:$0x20] %vm422, %v421
  %s435 = scalar_lea.vmem %s1, 207
  %436 = vst.msk [vmem:[%s435] sm:$0x40] %vm422, %v421
  %s437 = scalar_lea.vmem %s1, 238
  %438 = vst.msk [vmem:[%s437] sm:$0x80] %vm422, %v421
  %v439 = vld [vmem:[%s0] sm:$0xff]
  %440 = vrot.lane.b32.xlu0 %v439, 106
  %v441 = vpop.permute.xlu0 %440
  %vm442 = vcmask 7168
  %s443 = scalar_lea.vmem %s1, 22
  %444 = vst.msk [vmem:[%s443] sm:$0x1] %vm442, %v441
  %s445 = scalar_lea.vmem %s1, 53
  %446 = vst.msk [vmem:[%s445] sm:$0x2] %vm442, %v441
  %s447 = scalar_lea.vmem %s1, 84
  %448 = vst.msk [vmem:[%s447] sm:$0x4] %vm442, %v441
  %s449 = scalar_lea.vmem %s1, 115
  %450 = vst.msk [vmem:[%s449] sm:$0x8] %vm442, %v441
  %s451 = scalar_lea.vmem %s1, 146
  %452 = vst.msk [vmem:[%s451] sm:$0x10] %vm442, %v441
  %s453 = scalar_lea.vmem %s1, 177
  %454 = vst.msk [vmem:[%s453] sm:$0x20] %vm442, %v441
  %s455 = scalar_lea.vmem %s1, 208
  %456 = vst.msk [vmem:[%s455] sm:$0x40] %vm442, %v441
  %s457 = scalar_lea.vmem %s1, 239
  %458 = vst.msk [vmem:[%s457] sm:$0x80] %vm442, %v441
  %v459 = vld [vmem:[%s0] sm:$0xff]
  %460 = vrot.lane.b32.xlu0 %v459, 105
  %v461 = vpop.permute.xlu0 %460
  %vm462 = vcmask 7168
  %s463 = scalar_lea.vmem %s1, 23
  %464 = vst.msk [vmem:[%s463] sm:$0x1] %vm462, %v461
  %s465 = scalar_lea.vmem %s1, 54
  %466 = vst.msk [vmem:[%s465] sm:$0x2] %vm462, %v461
  %s467 = scalar_lea.vmem %s1, 85
  %468 = vst.msk [vmem:[%s467] sm:$0x4] %vm462, %v461
  %s469 = scalar_lea.vmem %s1, 116
  %470 = vst.msk [vmem:[%s469] sm:$0x8] %vm462, %v461
  %s471 = scalar_lea.vmem %s1, 147
  %472 = vst.msk [vmem:[%s471] sm:$0x10] %vm462, %v461
  %s473 = scalar_lea.vmem %s1, 178
  %474 = vst.msk [vmem:[%s473] sm:$0x20] %vm462, %v461
  %s475 = scalar_lea.vmem %s1, 209
  %476 = vst.msk [vmem:[%s475] sm:$0x40] %vm462, %v461
  %s477 = scalar_lea.vmem %s1, 240
  %478 = vst.msk [vmem:[%s477] sm:$0x80] %vm462, %v461
  %v479 = vld [vmem:[%s0] sm:$0xff]
  %480 = vrot.lane.b32.xlu0 %v479, 104
  %v481 = vpop.permute.xlu0 %480
  %vm482 = vcmask 7168
  %s483 = scalar_lea.vmem %s1, 24
  %484 = vst.msk [vmem:[%s483] sm:$0x1] %vm482, %v481
  %s485 = scalar_lea.vmem %s1, 55
  %486 = vst.msk [vmem:[%s485] sm:$0x2] %vm482, %v481
  %s487 = scalar_lea.vmem %s1, 86
  %488 = vst.msk [vmem:[%s487] sm:$0x4] %vm482, %v481
  %s489 = scalar_lea.vmem %s1, 117
  %490 = vst.msk [vmem:[%s489] sm:$0x8] %vm482, %v481
  %s491 = scalar_lea.vmem %s1, 148
  %492 = vst.msk [vmem:[%s491] sm:$0x10] %vm482, %v481
  %s493 = scalar_lea.vmem %s1, 179
  %494 = vst.msk [vmem:[%s493] sm:$0x20] %vm482, %v481
  %s495 = scalar_lea.vmem %s1, 210
  %496 = vst.msk [vmem:[%s495] sm:$0x40] %vm482, %v481
  %s497 = scalar_lea.vmem %s1, 241
  %498 = vst.msk [vmem:[%s497] sm:$0x80] %vm482, %v481
  %v499 = vld [vmem:[%s0] sm:$0xff]
  %500 = vrot.lane.b32.xlu0 %v499, 103
  %v501 = vpop.permute.xlu0 %500
  %vm502 = vcmask 7168
  %s503 = scalar_lea.vmem %s1, 25
  %504 = vst.msk [vmem:[%s503] sm:$0x1] %vm502, %v501
  %s505 = scalar_lea.vmem %s1, 56
  %506 = vst.msk [vmem:[%s505] sm:$0x2] %vm502, %v501
  %s507 = scalar_lea.vmem %s1, 87
  %508 = vst.msk [vmem:[%s507] sm:$0x4] %vm502, %v501
  %s509 = scalar_lea.vmem %s1, 118
  %510 = vst.msk [vmem:[%s509] sm:$0x8] %vm502, %v501
  %s511 = scalar_lea.vmem %s1, 149
  %512 = vst.msk [vmem:[%s511] sm:$0x10] %vm502, %v501
  %s513 = scalar_lea.vmem %s1, 180
  %514 = vst.msk [vmem:[%s513] sm:$0x20] %vm502, %v501
  %s515 = scalar_lea.vmem %s1, 211
  %516 = vst.msk [vmem:[%s515] sm:$0x40] %vm502, %v501
  %s517 = scalar_lea.vmem %s1, 242
  %518 = vst.msk [vmem:[%s517] sm:$0x80] %vm502, %v501
  %v519 = vld [vmem:[%s0] sm:$0xff]
  %520 = vrot.lane.b32.xlu0 %v519, 102
  %v521 = vpop.permute.xlu0 %520
  %vm522 = vcmask 7168
  %s523 = scalar_lea.vmem %s1, 26
  %524 = vst.msk [vmem:[%s523] sm:$0x1] %vm522, %v521
  %s525 = scalar_lea.vmem %s1, 57
  %526 = vst.msk [vmem:[%s525] sm:$0x2] %vm522, %v521
  %s527 = scalar_lea.vmem %s1, 88
  %528 = vst.msk [vmem:[%s527] sm:$0x4] %vm522, %v521
  %s529 = scalar_lea.vmem %s1, 119
  %530 = vst.msk [vmem:[%s529] sm:$0x8] %vm522, %v521
  %s531 = scalar_lea.vmem %s1, 150
  %532 = vst.msk [vmem:[%s531] sm:$0x10] %vm522, %v521
  %s533 = scalar_lea.vmem %s1, 181
  %534 = vst.msk [vmem:[%s533] sm:$0x20] %vm522, %v521
  %s535 = scalar_lea.vmem %s1, 212
  %536 = vst.msk [vmem:[%s535] sm:$0x40] %vm522, %v521
  %s537 = scalar_lea.vmem %s1, 243
  %538 = vst.msk [vmem:[%s537] sm:$0x80] %vm522, %v521
  %v539 = vld [vmem:[%s0] sm:$0xff]
  %540 = vrot.lane.b32.xlu0 %v539, 101
  %v541 = vpop.permute.xlu0 %540
  %vm542 = vcmask 7168
  %s543 = scalar_lea.vmem %s1, 27
  %544 = vst.msk [vmem:[%s543] sm:$0x1] %vm542, %v541
  %s545 = scalar_lea.vmem %s1, 58
  %546 = vst.msk [vmem:[%s545] sm:$0x2] %vm542, %v541
  %s547 = scalar_lea.vmem %s1, 89
  %548 = vst.msk [vmem:[%s547] sm:$0x4] %vm542, %v541
  %s549 = scalar_lea.vmem %s1, 120
  %550 = vst.msk [vmem:[%s549] sm:$0x8] %vm542, %v541
  %s551 = scalar_lea.vmem %s1, 151
  %552 = vst.msk [vmem:[%s551] sm:$0x10] %vm542, %v541
  %s553 = scalar_lea.vmem %s1, 182
  %554 = vst.msk [vmem:[%s553] sm:$0x20] %vm542, %v541
  %s555 = scalar_lea.vmem %s1, 213
  %556 = vst.msk [vmem:[%s555] sm:$0x40] %vm542, %v541
  %s557 = scalar_lea.vmem %s1, 244
  %558 = vst.msk [vmem:[%s557] sm:$0x80] %vm542, %v541
  %v559 = vld [vmem:[%s0] sm:$0xff]
  %560 = vrot.lane.b32.xlu0 %v559, 100
  %v561 = vpop.permute.xlu0 %560
  %vm562 = vcmask 7168
  %s563 = scalar_lea.vmem %s1, 28
  %564 = vst.msk [vmem:[%s563] sm:$0x1] %vm562, %v561
  %s565 = scalar_lea.vmem %s1, 59
  %566 = vst.msk [vmem:[%s565] sm:$0x2] %vm562, %v561
  %s567 = scalar_lea.vmem %s1, 90
  %568 = vst.msk [vmem:[%s567] sm:$0x4] %vm562, %v561
  %s569 = scalar_lea.vmem %s1, 121
  %570 = vst.msk [vmem:[%s569] sm:$0x8] %vm562, %v561
  %s571 = scalar_lea.vmem %s1, 152
  %572 = vst.msk [vmem:[%s571] sm:$0x10] %vm562, %v561
  %s573 = scalar_lea.vmem %s1, 183
  %574 = vst.msk [vmem:[%s573] sm:$0x20] %vm562, %v561
  %s575 = scalar_lea.vmem %s1, 214
  %576 = vst.msk [vmem:[%s575] sm:$0x40] %vm562, %v561
  %s577 = scalar_lea.vmem %s1, 245
  %578 = vst.msk [vmem:[%s577] sm:$0x80] %vm562, %v561
  %v579 = vld [vmem:[%s0] sm:$0xff]
  %580 = vrot.lane.b32.xlu0 %v579, 99
  %v581 = vpop.permute.xlu0 %580
  %vm582 = vcmask 7168
  %s583 = scalar_lea.vmem %s1, 29
  %584 = vst.msk [vmem:[%s583] sm:$0x1] %vm582, %v581
  %s585 = scalar_lea.vmem %s1, 60
  %586 = vst.msk [vmem:[%s585] sm:$0x2] %vm582, %v581
  %s587 = scalar_lea.vmem %s1, 91
  %588 = vst.msk [vmem:[%s587] sm:$0x4] %vm582, %v581
  %s589 = scalar_lea.vmem %s1, 122
  %590 = vst.msk [vmem:[%s589] sm:$0x8] %vm582, %v581
  %s591 = scalar_lea.vmem %s1, 153
  %592 = vst.msk [vmem:[%s591] sm:$0x10] %vm582, %v581
  %s593 = scalar_lea.vmem %s1, 184
  %594 = vst.msk [vmem:[%s593] sm:$0x20] %vm582, %v581
  %s595 = scalar_lea.vmem %s1, 215
  %596 = vst.msk [vmem:[%s595] sm:$0x40] %vm582, %v581
  %s597 = scalar_lea.vmem %s1, 246
  %598 = vst.msk [vmem:[%s597] sm:$0x80] %vm582, %v581
  %v599 = vld [vmem:[%s0] sm:$0xff]
  %600 = vrot.lane.b32.xlu0 %v599, 98
  %v601 = vpop.permute.xlu0 %600
  %vm602 = vcmask 7168
  %s603 = scalar_lea.vmem %s1, 30
  %604 = vst.msk [vmem:[%s603] sm:$0x1] %vm602, %v601
  %s605 = scalar_lea.vmem %s1, 61
  %606 = vst.msk [vmem:[%s605] sm:$0x2] %vm602, %v601
  %s607 = scalar_lea.vmem %s1, 92
  %608 = vst.msk [vmem:[%s607] sm:$0x4] %vm602, %v601
  %s609 = scalar_lea.vmem %s1, 123
  %610 = vst.msk [vmem:[%s609] sm:$0x8] %vm602, %v601
  %s611 = scalar_lea.vmem %s1, 154
  %612 = vst.msk [vmem:[%s611] sm:$0x10] %vm602, %v601
  %s613 = scalar_lea.vmem %s1, 185
  %614 = vst.msk [vmem:[%s613] sm:$0x20] %vm602, %v601
  %s615 = scalar_lea.vmem %s1, 216
  %616 = vst.msk [vmem:[%s615] sm:$0x40] %vm602, %v601
  %s617 = scalar_lea.vmem %s1, 247
  %618 = vst.msk [vmem:[%s617] sm:$0x80] %vm602, %v601
  %v619 = vld [vmem:[%s0] sm:$0xff]
  %620 = vrot.lane.b32.xlu0 %v619, 97
  %v621 = vpop.permute.xlu0 %620
  %vm622 = vcmask 7168
  %s623 = scalar_lea.vmem %s1, 31
  %624 = vst.msk [vmem:[%s623] sm:$0x1] %vm622, %v621
  %s625 = scalar_lea.vmem %s1, 62
  %626 = vst.msk [vmem:[%s625] sm:$0x2] %vm622, %v621
  %s627 = scalar_lea.vmem %s1, 93
  %628 = vst.msk [vmem:[%s627] sm:$0x4] %vm622, %v621
  %s629 = scalar_lea.vmem %s1, 124
  %630 = vst.msk [vmem:[%s629] sm:$0x8] %vm622, %v621
  %s631 = scalar_lea.vmem %s1, 155
  %632 = vst.msk [vmem:[%s631] sm:$0x10] %vm622, %v621
  %s633 = scalar_lea.vmem %s1, 186
  %634 = vst.msk [vmem:[%s633] sm:$0x20] %vm622, %v621
  %s635 = scalar_lea.vmem %s1, 217
  %636 = vst.msk [vmem:[%s635] sm:$0x40] %vm622, %v621
  %s637 = scalar_lea.vmem %s1, 248
  %638 = vst.msk [vmem:[%s637] sm:$0x80] %vm622, %v621

// kernel: iclassifier_forward.1
$region0: #{iclassifier_forward.1}
  #allocation0 [shape = 'u32[]', space=smem, size = 0x4, offset = 0x4, fixed_abs, tag = 'smem constant byte address 0x4 - core index']
  #allocation1 [shape = 'u32[144,128]{1,0:T(1,128)}', space=vmem, size = 0x12000, scoped, tag = 'internal scratch']
  #allocation2 [shape = 'f32[8,32]{1,0:T(8,128)}', space=vmem, size = 0x1000, scoped, tag = 'scratch operand']
  %s0 = inlined_call_operand.vmem [shape: f32[32,256], index: 0, kind: input, shape index: {}]
  %s1 = inlined_call_operand.vmem [shape: f32[256,32], index: 1, kind: input, shape index: {}]
  %s2 = inlined_call_operand.vmem [shape: f32[256,1], index: 2, kind: input, shape index: {}]
  %s3 = inlined_call_operand.vmem [shape: f32[32,8], index: 3, kind: input, shape index: {}]
  %s4 = inlined_call_operand.vmem [shape: f32[1,8], index: 4, kind: input, shape index: {}]
  %s5 = inlined_call_operand.vmem [shape: f32[8,128], index: 5, kind: output, shape index: {}]
  %s6 = sld [smem:[#allocation0]]
  $region38: #{iclassifier_forward.1} parent=0
    _
  %s8 = ssub.s32 1, %s6
  %s9 = scalar_select 0, %s8, %s6
  // Predicated region
  $region2: #{iclassifier_forward.1} parent=0 // pred_check
    _
  $region3: #{iclassifier_forward.1} parent=0 // pred_check_branch
    %11 = sbr.rel (0) target = $region5
  $region4: #{iclassifier_forward.1} parent=0 // pred_region
    _
  $region5: #{iclassifier_forward.1} parent=0 // pred_fallthru
    _
  // Predicated region
  $region6: #{iclassifier_forward.1} parent=0 // pred_check
    _
  $region7: #{iclassifier_forward.1} parent=0 // pred_check_branch
    %13 = sbr.rel (0) target = $region9
  $region8: #{iclassifier_forward.1} parent=0 // pred_region
    _
  $region9: #{iclassifier_forward.1} parent=0 // pred_fallthru
    _
  // Predicated region
  $region10: #{iclassifier_forward.1} parent=0 // pred_check
    _
  $region11: #{iclassifier_forward.1} parent=0 // pred_check_branch
    %15 = sbr.rel (0) target = $region13
  $region12: #{iclassifier_forward.1} parent=0 // pred_region
    _
  $region13: #{iclassifier_forward.1} parent=0 // pred_fallthru
    _
  // Predicated region
  $region14: #{iclassifier_forward.1} parent=0 // pred_check
    _
  $region15: #{iclassifier_forward.1} parent=0 // pred_check_branch
    %17 = sbr.rel (0) target = $region17
  $region16: #{iclassifier_forward.1} parent=0 // pred_region
    _
  $region17: #{iclassifier_forward.1} parent=0 // pred_fallthru
    _
  // Predicated region
  $region18: #{iclassifier_forward.1} parent=0 // pred_check
    _
  $region19: #{iclassifier_forward.1} parent=0 // pred_check_branch
    %19 = sbr.rel (0) target = $region21
  $region20: #{iclassifier_forward.1} parent=0 // pred_region
    _
  $region21: #{iclassifier_forward.1} parent=0 // pred_fallthru
    _
  %p20 = scmp.eq.s32.totalorder 0, 0
  // Predicated region
  $region22: #{iclassifier_forward.1} parent=0 // pred_check
    %p21 = pneg %p20
  $region23: #{iclassifier_forward.1} parent=0 // pred_check_branch
    %23 = sbr.rel (%p21) target = $region25
  $region24: #{iclassifier_forward.1} parent=0 // pred_region
    %vm24 = vcmask 261120
    %25 = vst.msk [vmem:[#allocation2] sm:$0xff] %vm24, 0.0
  $region25: #{iclassifier_forward.1} parent=0 // pred_fallthru
    _
  %v26 = vld [vmem:[%s1] sm:$0xff]
  %v27 = vld [vmem:[%s1 + $0x8] sm:$0xff]
  %v28 = vld [vmem:[%s1 + $0x10] sm:$0xff]
  %v29 = vld [vmem:[%s1 + $0x18] sm:$0xff]
  %v30 = vld [vmem:[%s1 + $0x20] sm:$0xff]
  %v31 = vld [vmem:[%s1 + $0x28] sm:$0xff]
  %v32 = vld [vmem:[%s1 + $0x30] sm:$0xff]
  %v33 = vld [vmem:[%s1 + $0x38] sm:$0xff]
  %v34 = vld [vmem:[%s1 + $0x40] sm:$0xff]
  %v35 = vld [vmem:[%s1 + $0x48] sm:$0xff]
  %v36 = vld [vmem:[%s1 + $0x50] sm:$0xff]
  %v37 = vld [vmem:[%s1 + $0x58] sm:$0xff]
  %v38 = vld [vmem:[%s1 + $0x60] sm:$0xff]
  %v39 = vld [vmem:[%s1 + $0x68] sm:$0xff]
  %v40 = vld [vmem:[%s1 + $0x70] sm:$0xff]
  %v41 = vld [vmem:[%s1 + $0x78] sm:$0xff]
  %v42 = vld [vmem:[%s1 + $0x80] sm:$0xff]
  %v43 = vld [vmem:[%s1 + $0x88] sm:$0xff]
  %v44 = vld [vmem:[%s1 + $0x90] sm:$0xff]
  %v45 = vld [vmem:[%s1 + $0x98] sm:$0xff]
  %v46 = vld [vmem:[%s1 + $0xa0] sm:$0xff]
  %v47 = vld [vmem:[%s1 + $0xa8] sm:$0xff]
  %v48 = vld [vmem:[%s1 + $0xb0] sm:$0xff]
  %v49 = vld [vmem:[%s1 + $0xb8] sm:$0xff]
  %v50 = vld [vmem:[%s1 + $0xc0] sm:$0xff]
  %v51 = vld [vmem:[%s1 + $0xc8] sm:$0xff]
  %v52 = vld [vmem:[%s1 + $0xd0] sm:$0xff]
  %v53 = vld [vmem:[%s1 + $0xd8] sm:$0xff]
  %v54 = vld [vmem:[%s1 + $0xe0] sm:$0xff]
  %v55 = vld [vmem:[%s1 + $0xe8] sm:$0xff]
  %v56 = vld [vmem:[%s1 + $0xf0] sm:$0xff]
  %v57 = vld [vmem:[%s1 + $0xf8] sm:$0xff]
  %v58 = vld [vmem:[%s2] sm:$0xff]
  %v59 = vld [vmem:[%s2 + $0x8] sm:$0xff]
  %v60 = vld [vmem:[%s2 + $0x10] sm:$0xff]
  %v61 = vld [vmem:[%s2 + $0x18] sm:$0xff]
  %v62 = vld [vmem:[%s2 + $0x20] sm:$0xff]
  %v63 = vld [vmem:[%s2 + $0x28] sm:$0xff]
  %v64 = vld [vmem:[%s2 + $0x30] sm:$0xff]
  %v65 = vld [vmem:[%s2 + $0x38] sm:$0xff]
  %v66 = vld [vmem:[%s2 + $0x40] sm:$0xff]
  %v67 = vld [vmem:[%s2 + $0x48] sm:$0xff]
  %v68 = vld [vmem:[%s2 + $0x50] sm:$0xff]
  %v69 = vld [vmem:[%s2 + $0x58] sm:$0xff]
  %v70 = vld [vmem:[%s2 + $0x60] sm:$0xff]
  %v71 = vld [vmem:[%s2 + $0x68] sm:$0xff]
  %v72 = vld [vmem:[%s2 + $0x70] sm:$0xff]
  %v73 = vld [vmem:[%s2 + $0x78] sm:$0xff]
  %v74 = vld [vmem:[%s2 + $0x80] sm:$0xff]
  %v75 = vld [vmem:[%s2 + $0x88] sm:$0xff]
  %v76 = vld [vmem:[%s2 + $0x90] sm:$0xff]
  %v77 = vld [vmem:[%s2 + $0x98] sm:$0xff]
  %v78 = vld [vmem:[%s2 + $0xa0] sm:$0xff]
  %v79 = vld [vmem:[%s2 + $0xa8] sm:$0xff]
  %v80 = vld [vmem:[%s2 + $0xb0] sm:$0xff]
  %v81 = vld [vmem:[%s2 + $0xb8] sm:$0xff]
  %v82 = vld [vmem:[%s2 + $0xc0] sm:$0xff]
  %v83 = vld [vmem:[%s2 + $0xc8] sm:$0xff]
  %v84 = vld [vmem:[%s2 + $0xd0] sm:$0xff]
  %v85 = vld [vmem:[%s2 + $0xd8] sm:$0xff]
  %v86 = vld [vmem:[%s2 + $0xe0] sm:$0xff]
  %v87 = vld [vmem:[%s2 + $0xe8] sm:$0xff]
  %v88 = vld [vmem:[%s2 + $0xf0] sm:$0xff]
  %v89 = vld [vmem:[%s2 + $0xf8] sm:$0xff]
  %v90 = vld [vmem:[%s0] sm:$0xff]
  %v91 = vld [vmem:[%s0 + $0x8] sm:$0xff]
  %v92 = vld [vmem:[%s0 + $0x10] sm:$0xff]
  %v93 = vld [vmem:[%s0 + $0x18] sm:$0xff]
  %v94 = vld [vmem:[%s0 + $0x20] sm:$0xff]
  %v95 = vld [vmem:[%s0 + $0x28] sm:$0xff]
  %v96 = vld [vmem:[%s0 + $0x30] sm:$0xff]
  %v97 = vld [vmem:[%s0 + $0x38] sm:$0xff]
  %99 = vset.pattern.permute.xlu0 0
  %100 = vperm.xlu0 %99, %v58
  %v101 = vpop.permute.xlu0 %100
  %104 = vset.pattern.permute.xlu0 0
  %105 = vperm.xlu0 %104, %v59
  %v106 = vpop.permute.xlu0 %105
  %109 = vset.pattern.permute.xlu0 0
  %110 = vperm.xlu0 %109, %v60
  %v111 = vpop.permute.xlu0 %110
  %114 = vset.pattern.permute.xlu0 0
  %115 = vperm.xlu0 %114, %v61
  %v116 = vpop.permute.xlu0 %115
  %119 = vset.pattern.permute.xlu0 0
  %120 = vperm.xlu0 %119, %v62
  %v121 = vpop.permute.xlu0 %120
  %124 = vset.pattern.permute.xlu0 0
  %125 = vperm.xlu0 %124, %v63
  %v126 = vpop.permute.xlu0 %125
  %129 = vset.pattern.permute.xlu0 0
  %130 = vperm.xlu0 %129, %v64
  %v131 = vpop.permute.xlu0 %130
  %134 = vset.pattern.permute.xlu0 0
  %135 = vperm.xlu0 %134, %v65
  %v136 = vpop.permute.xlu0 %135
  %139 = vset.pattern.permute.xlu0 0
  %140 = vperm.xlu0 %139, %v66
  %v141 = vpop.permute.xlu0 %140
  %144 = vset.pattern.permute.xlu0 0
  %145 = vperm.xlu0 %144, %v67
  %v146 = vpop.permute.xlu0 %145
  %149 = vset.pattern.permute.xlu0 0
  %150 = vperm.xlu0 %149, %v68
  %v151 = vpop.permute.xlu0 %150
  %154 = vset.pattern.permute.xlu0 0
  %155 = vperm.xlu0 %154, %v69
  %v156 = vpop.permute.xlu0 %155
  %159 = vset.pattern.permute.xlu0 0
  %160 = vperm.xlu0 %159, %v70
  %v161 = vpop.permute.xlu0 %160
  %164 = vset.pattern.permute.xlu0 0
  %165 = vperm.xlu0 %164, %v71
  %v166 = vpop.permute.xlu0 %165
  %169 = vset.pattern.permute.xlu0 0
  %170 = vperm.xlu0 %169, %v72
  %v171 = vpop.permute.xlu0 %170
  %174 = vset.pattern.permute.xlu0 0
  %175 = vperm.xlu0 %174, %v73
  %v176 = vpop.permute.xlu0 %175
  %179 = vset.pattern.permute.xlu0 0
  %180 = vperm.xlu0 %179, %v74
  %v181 = vpop.permute.xlu0 %180
  %184 = vset.pattern.permute.xlu0 0
  %185 = vperm.xlu0 %184, %v75
  %v186 = vpop.permute.xlu0 %185
  %189 = vset.pattern.permute.xlu0 0
  %190 = vperm.xlu0 %189, %v76
  %v191 = vpop.permute.xlu0 %190
  %194 = vset.pattern.permute.xlu0 0
  %195 = vperm.xlu0 %194, %v77
  %v196 = vpop.permute.xlu0 %195
  %199 = vset.pattern.permute.xlu0 0
  %200 = vperm.xlu0 %199, %v78
  %v201 = vpop.permute.xlu0 %200
  %204 = vset.pattern.permute.xlu0 0
  %205 = vperm.xlu0 %204, %v79
  %v206 = vpop.permute.xlu0 %205
  %209 = vset.pattern.permute.xlu0 0
  %210 = vperm.xlu0 %209, %v80
  %v211 = vpop.permute.xlu0 %210
  %214 = vset.pattern.permute.xlu0 0
  %215 = vperm.xlu0 %214, %v81
  %v216 = vpop.permute.xlu0 %215
  %219 = vset.pattern.permute.xlu0 0
  %220 = vperm.xlu0 %219, %v82
  %v221 = vpop.permute.xlu0 %220
  %224 = vset.pattern.permute.xlu0 0
  %225 = vperm.xlu0 %224, %v83
  %v226 = vpop.permute.xlu0 %225
  %229 = vset.pattern.permute.xlu0 0
  %230 = vperm.xlu0 %229, %v84
  %v231 = vpop.permute.xlu0 %230
  %234 = vset.pattern.permute.xlu0 0
  %235 = vperm.xlu0 %234, %v85
  %v236 = vpop.permute.xlu0 %235
  %239 = vset.pattern.permute.xlu0 0
  %240 = vperm.xlu0 %239, %v86
  %v241 = vpop.permute.xlu0 %240
  %244 = vset.pattern.permute.xlu0 0
  %245 = vperm.xlu0 %244, %v87
  %v246 = vpop.permute.xlu0 %245
  %249 = vset.pattern.permute.xlu0 0
  %250 = vperm.xlu0 %249, %v88
  %v251 = vpop.permute.xlu0 %250
  %254 = vset.pattern.permute.xlu0 0
  %255 = vperm.xlu0 %254, %v89
  %v256 = vpop.permute.xlu0 %255
  %vm258 = vcmask 261120
  %v260 = vsel %vm258, %v26, 0
  %v263 = vsel %vm258, %v27, 0
  %v266 = vsel %vm258, %v28, 0
  %v269 = vsel %vm258, %v29, 0
  %v272 = vsel %vm258, %v30, 0
  %v275 = vsel %vm258, %v31, 0
  %v278 = vsel %vm258, %v32, 0
  %v281 = vsel %vm258, %v33, 0
  %v284 = vsel %vm258, %v34, 0
  %v287 = vsel %vm258, %v35, 0
  %v290 = vsel %vm258, %v36, 0
  %v293 = vsel %vm258, %v37, 0
  %v296 = vsel %vm258, %v38, 0
  %v299 = vsel %vm258, %v39, 0
  %v302 = vsel %vm258, %v40, 0
  %v305 = vsel %vm258, %v41, 0
  %v308 = vsel %vm258, %v42, 0
  %v311 = vsel %vm258, %v43, 0
  %v314 = vsel %vm258, %v44, 0
  %v317 = vsel %vm258, %v45, 0
  %v320 = vsel %vm258, %v46, 0
  %v323 = vsel %vm258, %v47, 0
  %v326 = vsel %vm258, %v48, 0
  %v329 = vsel %vm258, %v49, 0
  %v332 = vsel %vm258, %v50, 0
  %v335 = vsel %vm258, %v51, 0
  %v338 = vsel %vm258, %v52, 0
  %v341 = vsel %vm258, %v53, 0
  %v344 = vsel %vm258, %v54, 0
  %v347 = vsel %vm258, %v55, 0
  %v350 = vsel %vm258, %v56, 0
  %v353 = vsel %vm258, %v57, 0
  %355 = vmatprep.subr.mxu0 0.0
  %356 = vmatpush1.msra.mxu0 0.0
  %357 = vmatprep.subr.mxu0 0.0
  %358 = vmatpush1.msra.mxu0 0.0
  %359 = vmatprep.subr.mxu0 0.0
  %360 = vmatpush1.msra.mxu0 0.0
  %361 = vmatprep.subr.mxu0 0.0
  %362 = vmatpush1.msra.mxu0 0.0
  %363 = vmatprep.subr.mxu0 0.0
  %364 = vmatpush1.msra.mxu0 0.0
  %365 = vmatprep.subr.mxu0 0.0
  %366 = vmatpush1.msra.mxu0 0.0
  %367 = vmatprep.subr.mxu0 0.0
  %368 = vmatpush1.msra.mxu0 0.0
  %369 = vmatprep.subr.mxu0 0.0
  %370 = vmatpush1.msra.mxu0 0.0
  %371 = vmatprep.subr.mxu0 0.0
  %372 = vmatpush1.msra.mxu0 0.0
  %373 = vmatprep.subr.mxu0 0.0
  %374 = vmatpush1.msra.mxu0 0.0
  %375 = vmatprep.subr.mxu0 0.0
  %376 = vmatpush1.msra.mxu0 0.0
  %377 = vmatprep.subr.mxu0 0.0
  %378 = vmatpush1.msra.mxu0 0.0
  %379 = vmatprep.subr.mxu0 %v97
  %380 = vmatpush1.msra.mxu0 %v96
  %381 = vmatprep.subr.mxu0 %v95
  %382 = vmatpush1.msra.mxu0 %v94
  %383 = vmatprep.subr.mxu0 %v93
  %384 = vmatpush1.msra.mxu0 %v92
  %385 = vmatprep.subr.mxu0 %v91
  %386 = vmatpush1.msra.mxu0 %v90
  %387 = vmatprep.subr.mxu0 0.0
  %388 = vmatpush2.msra.mxu0 0.0
  %389 = vmatprep.subr.mxu0 0.0
  %390 = vmatpush2.msra.mxu0 0.0
  %391 = vmatprep.subr.mxu0 0.0
  %392 = vmatpush2.msra.mxu0 0.0
  %393 = vmatprep.subr.mxu0 0.0
  %394 = vmatpush2.msra.mxu0 0.0
  %395 = vmatprep.subr.mxu0 0.0
  %396 = vmatpush2.msra.mxu0 0.0
  %397 = vmatprep.subr.mxu0 0.0
  %398 = vmatpush2.msra.mxu0 0.0
  %399 = vmatprep.subr.mxu0 0.0
  %400 = vmatpush2.msra.mxu0 0.0
  %401 = vmatprep.subr.mxu0 0.0
  %402 = vmatpush2.msra.mxu0 0.0
  %403 = vmatprep.subr.mxu0 0.0
  %404 = vmatpush2.msra.mxu0 0.0
  %405 = vmatprep.subr.mxu0 0.0
  %406 = vmatpush2.msra.mxu0 0.0
  %407 = vmatprep.subr.mxu0 0.0
  %408 = vmatpush2.msra.mxu0 0.0
  %409 = vmatprep.subr.mxu0 0.0
  %410 = vmatpush2.msra.mxu0 0.0
  %411 = vmatprep.subr.mxu0 0.0
  %412 = vmatpush2.msra.mxu0 0.0
  %413 = vmatprep.subr.mxu0 0.0
  %414 = vmatpush2.msra.mxu0 0.0
  %415 = vmatprep.subr.mxu0 0.0
  %416 = vmatpush2.msra.mxu0 0.0
  %417 = vmatprep.subr.mxu0 0.0
  %418 = vmatpush2.msra.mxu0 0.0
  %419 = vmatprep.mubr.f32.mxu0 0.0
  %420 = vmatmul.mubr.f32.gmra.mxu0 %v260
  %v421 = vpop.f32.mrf.mxu0
  %v422 = vadd.f32 %v101, %v421
  %v423 = vpop.f32.mrf.mxu0
  %v424 = vadd.f32 %v101, %v423
  %425 = vmatprep.mubr.f32.mxu0 0.0
  %426 = vmatmul.mubr.f32.gmra.mxu0 %v263
  %v427 = vpop.f32.mrf.mxu0
  %v428 = vadd.f32 %v106, %v427
  %v429 = vpop.f32.mrf.mxu0
  %v430 = vadd.f32 %v106, %v429
  %431 = vmatprep.mubr.f32.mxu0 0.0
  %432 = vmatmul.mubr.f32.gmra.mxu0 %v266
  %v433 = vpop.f32.mrf.mxu0
  %v434 = vadd.f32 %v111, %v433
  %v435 = vpop.f32.mrf.mxu0
  %v436 = vadd.f32 %v111, %v435
  %437 = vmatprep.mubr.f32.mxu0 0.0
  %438 = vmatmul.mubr.f32.gmra.mxu0 %v269
  %v439 = vpop.f32.mrf.mxu0
  %v440 = vadd.f32 %v116, %v439
  %v441 = vpop.f32.mrf.mxu0
  %v442 = vadd.f32 %v116, %v441
  %443 = vmatprep.mubr.f32.mxu0 0.0
  %444 = vmatmul.mubr.f32.gmra.mxu0 %v272
  %v445 = vpop.f32.mrf.mxu0
  %v446 = vadd.f32 %v121, %v445
  %v447 = vpop.f32.mrf.mxu0
  %v448 = vadd.f32 %v121, %v447
  %449 = vmatprep.mubr.f32.mxu0 0.0
  %450 = vmatmul.mubr.f32.gmra.mxu0 %v275
  %v451 = vpop.f32.mrf.mxu0
  %v452 = vadd.f32 %v126, %v451
  %v453 = vpop.f32.mrf.mxu0
  %v454 = vadd.f32 %v126, %v453
  %455 = vmatprep.mubr.f32.mxu0 0.0
  %456 = vmatmul.mubr.f32.gmra.mxu0 %v278
  %v457 = vpop.f32.mrf.mxu0
  %v458 = vadd.f32 %v131, %v457
  %v459 = vpop.f32.mrf.mxu0
  %v460 = vadd.f32 %v131, %v459
  %461 = vmatprep.mubr.f32.mxu0 0.0
  %462 = vmatmul.mubr.f32.gmra.mxu0 %v281
  %v463 = vpop.f32.mrf.mxu0
  %v464 = vadd.f32 %v136, %v463
  %v465 = vpop.f32.mrf.mxu0
  %v466 = vadd.f32 %v136, %v465
  %467 = vmatprep.mubr.f32.mxu0 0.0
  %468 = vmatmul.mubr.f32.gmra.mxu0 %v284
  %v469 = vpop.f32.mrf.mxu0
  %v470 = vadd.f32 %v141, %v469
  %v471 = vpop.f32.mrf.mxu0
  %v472 = vadd.f32 %v141, %v471
  %473 = vmatprep.mubr.f32.mxu0 0.0
  %474 = vmatmul.mubr.f32.gmra.mxu0 %v287
  %v475 = vpop.f32.mrf.mxu0
  %v476 = vadd.f32 %v146, %v475
  %v477 = vpop.f32.mrf.mxu0
  %v478 = vadd.f32 %v146, %v477
  %479 = vmatprep.mubr.f32.mxu0 0.0
  %480 = vmatmul.mubr.f32.gmra.mxu0 %v290
  %v481 = vpop.f32.mrf.mxu0
  %v482 = vadd.f32 %v151, %v481
  %v483 = vpop.f32.mrf.mxu0
  %v484 = vadd.f32 %v151, %v483
  %485 = vmatprep.mubr.f32.mxu0 0.0
  %486 = vmatmul.mubr.f32.gmra.mxu0 %v293
  %v487 = vpop.f32.mrf.mxu0
  %v488 = vadd.f32 %v156, %v487
  %v489 = vpop.f32.mrf.mxu0
  %v490 = vadd.f32 %v156, %v489
  %491 = vmatprep.mubr.f32.mxu0 0.0
  %492 = vmatmul.mubr.f32.gmra.mxu0 %v296
  %v493 = vpop.f32.mrf.mxu0
  %v494 = vadd.f32 %v161, %v493
  %v495 = vpop.f32.mrf.mxu0
  %v496 = vadd.f32 %v161, %v495
  %497 = vmatprep.mubr.f32.mxu0 0.0
  %498 = vmatmul.mubr.f32.gmra.mxu0 %v299
  %v499 = vpop.f32.mrf.mxu0
  %v500 = vadd.f32 %v166, %v499
  %v501 = vpop.f32.mrf.mxu0
  %v502 = vadd.f32 %v166, %v501
  %503 = vmatprep.mubr.f32.mxu0 0.0
  %504 = vmatmul.mubr.f32.gmra.mxu0 %v302
  %v505 = vpop.f32.mrf.mxu0
  %v506 = vadd.f32 %v171, %v505
  %v507 = vpop.f32.mrf.mxu0
  %v508 = vadd.f32 %v171, %v507
  %509 = vmatprep.mubr.f32.mxu0 0.0
  %510 = vmatmul.mubr.f32.gmra.mxu0 %v305
  %v511 = vpop.f32.mrf.mxu0
  %v512 = vadd.f32 %v176, %v511
  %v513 = vpop.f32.mrf.mxu0
  %v514 = vadd.f32 %v176, %v513
  %515 = vmatprep.mubr.f32.mxu0 0.0
  %516 = vmatmul.mubr.f32.gmra.mxu0 %v308
  %v517 = vpop.f32.mrf.mxu0
  %v518 = vadd.f32 %v181, %v517
  %v519 = vpop.f32.mrf.mxu0
  %v520 = vadd.f32 %v181, %v519
  %521 = vmatprep.mubr.f32.mxu0 0.0
  %522 = vmatmul.mubr.f32.gmra.mxu0 %v311
  %v523 = vpop.f32.mrf.mxu0
  %v524 = vadd.f32 %v186, %v523
  %v525 = vpop.f32.mrf.mxu0
  %v526 = vadd.f32 %v186, %v525
  %527 = vmatprep.mubr.f32.mxu0 0.0
  %528 = vmatmul.mubr.f32.gmra.mxu0 %v314
  %v529 = vpop.f32.mrf.mxu0
  %v530 = vadd.f32 %v191, %v529
  %v531 = vpop.f32.mrf.mxu0
  %v532 = vadd.f32 %v191, %v531
  %533 = vmatprep.mubr.f32.mxu0 0.0
  %534 = vmatmul.mubr.f32.gmra.mxu0 %v317
  %v535 = vpop.f32.mrf.mxu0
  %v536 = vadd.f32 %v196, %v535
  %v537 = vpop.f32.mrf.mxu0
  %v538 = vadd.f32 %v196, %v537
  %539 = vmatprep.mubr.f32.mxu0 0.0
  %540 = vmatmul.mubr.f32.gmra.mxu0 %v320
  %v541 = vpop.f32.mrf.mxu0
  %v542 = vadd.f32 %v201, %v541
  %v543 = vpop.f32.mrf.mxu0
  %v544 = vadd.f32 %v201, %v543
  %545 = vmatprep.mubr.f32.mxu0 0.0
  %546 = vmatmul.mubr.f32.gmra.mxu0 %v323
  %v547 = vpop.f32.mrf.mxu0
  %v548 = vadd.f32 %v206, %v547
  %v549 = vpop.f32.mrf.mxu0
  %v550 = vadd.f32 %v206, %v549
  %551 = vmatprep.mubr.f32.mxu0 0.0
  %552 = vmatmul.mubr.f32.gmra.mxu0 %v326
  %v553 = vpop.f32.mrf.mxu0
  %v554 = vadd.f32 %v211, %v553
  %v555 = vpop.f32.mrf.mxu0
  %v556 = vadd.f32 %v211, %v555
  %557 = vmatprep.mubr.f32.mxu0 0.0
  %558 = vmatmul.mubr.f32.gmra.mxu0 %v329
  %v559 = vpop.f32.mrf.mxu0
  %v560 = vadd.f32 %v216, %v559
  %v561 = vpop.f32.mrf.mxu0
  %v562 = vadd.f32 %v216, %v561
  %563 = vmatprep.mubr.f32.mxu0 0.0
  %564 = vmatmul.mubr.f32.gmra.mxu0 %v332
  %v565 = vpop.f32.mrf.mxu0
  %v566 = vadd.f32 %v221, %v565
  %v567 = vpop.f32.mrf.mxu0
  %v568 = vadd.f32 %v221, %v567
  %569 = vmatprep.mubr.f32.mxu0 0.0
  %570 = vmatmul.mubr.f32.gmra.mxu0 %v335
  %v571 = vpop.f32.mrf.mxu0
  %v572 = vadd.f32 %v226, %v571
  %v573 = vpop.f32.mrf.mxu0
  %v574 = vadd.f32 %v226, %v573
  %575 = vmatprep.mubr.f32.mxu0 0.0
  %576 = vmatmul.mubr.f32.gmra.mxu0 %v338
  %v577 = vpop.f32.mrf.mxu0
  %v578 = vadd.f32 %v231, %v577
  %v579 = vpop.f32.mrf.mxu0
  %v580 = vadd.f32 %v231, %v579
  %581 = vmatprep.mubr.f32.mxu0 0.0
  %582 = vmatmul.mubr.f32.gmra.mxu0 %v341
  %v583 = vpop.f32.mrf.mxu0
  %v584 = vadd.f32 %v236, %v583
  %v585 = vpop.f32.mrf.mxu0
  %v586 = vadd.f32 %v236, %v585
  %587 = vmatprep.mubr.f32.mxu0 0.0
  %588 = vmatmul.mubr.f32.gmra.mxu0 %v344
  %v589 = vpop.f32.mrf.mxu0
  %v590 = vadd.f32 %v241, %v589
  %v591 = vpop.f32.mrf.mxu0
  %v592 = vadd.f32 %v241, %v591
  %593 = vmatprep.mubr.f32.mxu0 0.0
  %594 = vmatmul.mubr.f32.gmra.mxu0 %v347
  %v595 = vpop.f32.mrf.mxu0
  %v596 = vadd.f32 %v246, %v595
  %v597 = vpop.f32.mrf.mxu0
  %v598 = vadd.f32 %v246, %v597
  %599 = vmatprep.mubr.f32.mxu0 0.0
  %600 = vmatmul.mubr.f32.gmra.mxu0 %v350
  %v601 = vpop.f32.mrf.mxu0
  %v602 = vadd.f32 %v251, %v601
  %v603 = vpop.f32.mrf.mxu0
  %v604 = vadd.f32 %v251, %v603
  %605 = vmatprep.mubr.f32.mxu0 0.0
  %606 = vmatmul.mubr.f32.gmra.mxu0 %v353
  %v607 = vpop.f32.mrf.mxu0
  %v608 = vadd.f32 %v256, %v607
  %v609 = vpop.f32.mrf.mxu0
  %v610 = vadd.f32 %v256, %v609
  %611 = vdwg.mxu0
  %v612 = vmax.f32 %v422, 0.0
  %v613 = vmax.f32 %v424, 0.0
  %v614 = vmax.f32 %v428, 0.0
  %v615 = vmax.f32 %v430, 0.0
  %v616 = vmax.f32 %v434, 0.0
  %v617 = vmax.f32 %v436, 0.0
  %v618 = vmax.f32 %v440, 0.0
  %v619 = vmax.f32 %v442, 0.0
  %v620 = vmax.f32 %v446, 0.0
  %v621 = vmax.f32 %v448, 0.0
  %v622 = vmax.f32 %v452, 0.0
  %v623 = vmax.f32 %v454, 0.0
  %v624 = vmax.f32 %v458, 0.0
  %v625 = vmax.f32 %v460, 0.0
  %v626 = vmax.f32 %v464, 0.0
  %v627 = vmax.f32 %v466, 0.0
  %v628 = vmax.f32 %v470, 0.0
  %v629 = vmax.f32 %v472, 0.0
  %v630 = vmax.f32 %v476, 0.0
  %v631 = vmax.f32 %v478, 0.0
  %v632 = vmax.f32 %v482, 0.0
  %v633 = vmax.f32 %v484, 0.0
  %v634 = vmax.f32 %v488, 0.0
  %v635 = vmax.f32 %v490, 0.0
  %v636 = vmax.f32 %v494, 0.0
  %v637 = vmax.f32 %v496, 0.0
  %v638 = vmax.f32 %v500, 0.0
  %v639 = vmax.f32 %v502, 0.0
  %v640 = vmax.f32 %v506, 0.0
  %v641 = vmax.f32 %v508, 0.0
  %v642 = vmax.f32 %v512, 0.0
  %v643 = vmax.f32 %v514, 0.0
  %v644 = vmax.f32 %v518, 0.0
  %v645 = vmax.f32 %v520, 0.0
  %v646 = vmax.f32 %v524, 0.0
  %v647 = vmax.f32 %v526, 0.0
  %v648 = vmax.f32 %v530, 0.0
  %v649 = vmax.f32 %v532, 0.0
  %v650 = vmax.f32 %v536, 0.0
  %v651 = vmax.f32 %v538, 0.0
  %v652 = vmax.f32 %v542, 0.0
  %v653 = vmax.f32 %v544, 0.0
  %v654 = vmax.f32 %v548, 0.0
  %v655 = vmax.f32 %v550, 0.0
  %v656 = vmax.f32 %v554, 0.0
  %v657 = vmax.f32 %v556, 0.0
  %v658 = vmax.f32 %v560, 0.0
  %v659 = vmax.f32 %v562, 0.0
  %v660 = vmax.f32 %v566, 0.0
  %v661 = vmax.f32 %v568, 0.0
  %v662 = vmax.f32 %v572, 0.0
  %v663 = vmax.f32 %v574, 0.0
  %v664 = vmax.f32 %v578, 0.0
  %v665 = vmax.f32 %v580, 0.0
  %v666 = vmax.f32 %v584, 0.0
  %v667 = vmax.f32 %v586, 0.0
  %v668 = vmax.f32 %v590, 0.0
  %v669 = vmax.f32 %v592, 0.0
  %v670 = vmax.f32 %v596, 0.0
  %v671 = vmax.f32 %v598, 0.0
  %v672 = vmax.f32 %v602, 0.0
  %v673 = vmax.f32 %v604, 0.0
  %v674 = vmax.f32 %v608, 0.0
  %v675 = vmax.f32 %v610, 0.0
  %v676 = vadd.f32 %v612, %v613
  %677 = vadd.xlane.f32.xlu0 %v676
  %v678 = vpop.xlane.xlu0 %677
  %v679 = vadd.f32 %v614, %v615
  %680 = vadd.xlane.f32.xlu0 %v679
  %v681 = vpop.xlane.xlu0 %680
  %v682 = vadd.f32 %v616, %v617
  %683 = vadd.xlane.f32.xlu0 %v682
  %v684 = vpop.xlane.xlu0 %683
  %v685 = vadd.f32 %v618, %v619
  %686 = vadd.xlane.f32.xlu0 %v685
  %v687 = vpop.xlane.xlu0 %686
  %v688 = vadd.f32 %v620, %v621
  %689 = vadd.xlane.f32.xlu0 %v688
  %v690 = vpop.xlane.xlu0 %689
  %v691 = vadd.f32 %v622, %v623
  %692 = vadd.xlane.f32.xlu0 %v691
  %v693 = vpop.xlane.xlu0 %692
  %v694 = vadd.f32 %v624, %v625
  %695 = vadd.xlane.f32.xlu0 %v694
  %v696 = vpop.xlane.xlu0 %695
  %v697 = vadd.f32 %v626, %v627
  %698 = vadd.xlane.f32.xlu0 %v697
  %v699 = vpop.xlane.xlu0 %698
  %v700 = vadd.f32 %v628, %v629
  %701 = vadd.xlane.f32.xlu0 %v700
  %v702 = vpop.xlane.xlu0 %701
  %v703 = vadd.f32 %v630, %v631
  %704 = vadd.xlane.f32.xlu0 %v703
  %v705 = vpop.xlane.xlu0 %704
  %v706 = vadd.f32 %v632, %v633
  %707 = vadd.xlane.f32.xlu0 %v706
  %v708 = vpop.xlane.xlu0 %707
  %v709 = vadd.f32 %v634, %v635
  %710 = vadd.xlane.f32.xlu0 %v709
  %v711 = vpop.xlane.xlu0 %710
  %v712 = vadd.f32 %v636, %v637
  %713 = vadd.xlane.f32.xlu0 %v712
  %v714 = vpop.xlane.xlu0 %713
  %v715 = vadd.f32 %v638, %v639
  %716 = vadd.xlane.f32.xlu0 %v715
  %v717 = vpop.xlane.xlu0 %716
  %v718 = vadd.f32 %v640, %v641
  %719 = vadd.xlane.f32.xlu0 %v718
  %v720 = vpop.xlane.xlu0 %719
  %v721 = vadd.f32 %v642, %v643
  %722 = vadd.xlane.f32.xlu0 %v721
  %v723 = vpop.xlane.xlu0 %722
  %v724 = vadd.f32 %v644, %v645
  %725 = vadd.xlane.f32.xlu0 %v724
  %v726 = vpop.xlane.xlu0 %725
  %v727 = vadd.f32 %v646, %v647
  %728 = vadd.xlane.f32.xlu0 %v727
  %v729 = vpop.xlane.xlu0 %728
  %v730 = vadd.f32 %v648, %v649
  %731 = vadd.xlane.f32.xlu0 %v730
  %v732 = vpop.xlane.xlu0 %731
  %v733 = vadd.f32 %v650, %v651
  %734 = vadd.xlane.f32.xlu0 %v733
  %v735 = vpop.xlane.xlu0 %734
  %v736 = vadd.f32 %v652, %v653
  %737 = vadd.xlane.f32.xlu0 %v736
  %v738 = vpop.xlane.xlu0 %737
  %v739 = vadd.f32 %v654, %v655
  %740 = vadd.xlane.f32.xlu0 %v739
  %v741 = vpop.xlane.xlu0 %740
  %v742 = vadd.f32 %v656, %v657
  %743 = vadd.xlane.f32.xlu0 %v742
  %v744 = vpop.xlane.xlu0 %743
  %v745 = vadd.f32 %v658, %v659
  %746 = vadd.xlane.f32.xlu0 %v745
  %v747 = vpop.xlane.xlu0 %746
  %v748 = vadd.f32 %v660, %v661
  %749 = vadd.xlane.f32.xlu0 %v748
  %v750 = vpop.xlane.xlu0 %749
  %v751 = vadd.f32 %v662, %v663
  %752 = vadd.xlane.f32.xlu0 %v751
  %v753 = vpop.xlane.xlu0 %752
  %v754 = vadd.f32 %v664, %v665
  %755 = vadd.xlane.f32.xlu0 %v754
  %v756 = vpop.xlane.xlu0 %755
  %v757 = vadd.f32 %v666, %v667
  %758 = vadd.xlane.f32.xlu0 %v757
  %v759 = vpop.xlane.xlu0 %758
  %v760 = vadd.f32 %v668, %v669
  %761 = vadd.xlane.f32.xlu0 %v760
  %v762 = vpop.xlane.xlu0 %761
  %v763 = vadd.f32 %v670, %v671
  %764 = vadd.xlane.f32.xlu0 %v763
  %v765 = vpop.xlane.xlu0 %764
  %v766 = vadd.f32 %v672, %v673
  %767 = vadd.xlane.f32.xlu0 %v766
  %v768 = vpop.xlane.xlu0 %767
  %v769 = vadd.f32 %v674, %v675
  %770 = vadd.xlane.f32.xlu0 %v769
  %v771 = vpop.xlane.xlu0 %770
  %v772 = vld [vmem:[#allocation2] sm:$0xff]
  %v805 = vlaneseq
  %v806 = vand.u32 %v805, 127
  %v807 = vlaneseq
  %v808 = vshrl.u32 %v807, 7
  %v809 = vsub.s32 %v806, %v808
  %v810 = vrot.slane %v678, %v809
  %v811 = vadd.s32 %v806, 4294967288
  %v812 = vlaneseq
  %v813 = vshrl.u32 %v812, 7
  %v814 = vsub.s32 %v811, %v813
  %v815 = vrot.slane %v681, %v814
  %vm816 = vcmask 130112
  %v817 = vsel %vm816, %v815, %v810
  %v818 = vadd.s32 %v806, 4294967280
  %v819 = vlaneseq
  %v820 = vshrl.u32 %v819, 7
  %v821 = vsub.s32 %v818, %v820
  %v822 = vrot.slane %v684, %v821
  %vm823 = vcmask 195712
  %v824 = vsel %vm823, %v822, %v817
  %v825 = vadd.s32 %v806, 4294967272
  %v826 = vlaneseq
  %v827 = vshrl.u32 %v826, 7
  %v828 = vsub.s32 %v825, %v827
  %v829 = vrot.slane %v687, %v828
  %vm830 = vcmask 261312
  %v831 = vsel %vm830, %v829, %v824
  %v832 = vlaneseq
  %v833 = vshrl.u32 %v832, 7
  %v834 = vsub.s32 %v806, %v833
  %v835 = vrot.slane %v690, %v834
  %v836 = vlaneseq
  %v837 = vshrl.u32 %v836, 7
  %v838 = vsub.s32 %v811, %v837
  %v839 = vrot.slane %v693, %v838
  %v840 = vsel %vm816, %v839, %v835
  %v841 = vlaneseq
  %v842 = vshrl.u32 %v841, 7
  %v843 = vsub.s32 %v818, %v842
  %v844 = vrot.slane %v696, %v843
  %v845 = vsel %vm823, %v844, %v840
  %v846 = vlaneseq
  %v847 = vshrl.u32 %v846, 7
  %v848 = vsub.s32 %v825, %v847
  %v849 = vrot.slane %v699, %v848
  %v850 = vsel %vm830, %v849, %v845
  %v851 = vlaneseq
  %v852 = vshrl.u32 %v851, 7
  %v853 = vsub.s32 %v806, %v852
  %v854 = vrot.slane %v702, %v853
  %v855 = vlaneseq
  %v856 = vshrl.u32 %v855, 7
  %v857 = vsub.s32 %v811, %v856
  %v858 = vrot.slane %v705, %v857
  %v859 = vsel %vm816, %v858, %v854
  %v860 = vlaneseq
  %v861 = vshrl.u32 %v860, 7
  %v862 = vsub.s32 %v818, %v861
  %v863 = vrot.slane %v708, %v862
  %v864 = vsel %vm823, %v863, %v859
  %v865 = vlaneseq
  %v866 = vshrl.u32 %v865, 7
  %v867 = vsub.s32 %v825, %v866
  %v868 = vrot.slane %v711, %v867
  %v869 = vsel %vm830, %v868, %v864
  %v870 = vlaneseq
  %v871 = vshrl.u32 %v870, 7
  %v872 = vsub.s32 %v806, %v871
  %v873 = vrot.slane %v714, %v872
  %v874 = vlaneseq
  %v875 = vshrl.u32 %v874, 7
  %v876 = vsub.s32 %v811, %v875
  %v877 = vrot.slane %v717, %v876
  %v878 = vsel %vm816, %v877, %v873
  %v879 = vlaneseq
  %v880 = vshrl.u32 %v879, 7
  %v881 = vsub.s32 %v818, %v880
  %v882 = vrot.slane %v720, %v881
  %v883 = vsel %vm823, %v882, %v878
  %v884 = vlaneseq
  %v885 = vshrl.u32 %v884, 7
  %v886 = vsub.s32 %v825, %v885
  %v887 = vrot.slane %v723, %v886
  %v888 = vsel %vm830, %v887, %v883
  %v889 = vlaneseq
  %v890 = vshrl.u32 %v889, 7
  %v891 = vsub.s32 %v806, %v890
  %v892 = vrot.slane %v726, %v891
  %v893 = vlaneseq
  %v894 = vshrl.u32 %v893, 7
  %v895 = vsub.s32 %v811, %v894
  %v896 = vrot.slane %v729, %v895
  %v897 = vsel %vm816, %v896, %v892
  %v898 = vlaneseq
  %v899 = vshrl.u32 %v898, 7
  %v900 = vsub.s32 %v818, %v899
  %v901 = vrot.slane %v732, %v900
  %v902 = vsel %vm823, %v901, %v897
  %v903 = vlaneseq
  %v904 = vshrl.u32 %v903, 7
  %v905 = vsub.s32 %v825, %v904
  %v906 = vrot.slane %v735, %v905
  %v907 = vsel %vm830, %v906, %v902
  %v908 = vlaneseq
  %v909 = vshrl.u32 %v908, 7
  %v910 = vsub.s32 %v806, %v909
  %v911 = vrot.slane %v738, %v910
  %v912 = vlaneseq
  %v913 = vshrl.u32 %v912, 7
  %v914 = vsub.s32 %v811, %v913
  %v915 = vrot.slane %v741, %v914
  %v916 = vsel %vm816, %v915, %v911
  %v917 = vlaneseq
  %v918 = vshrl.u32 %v917, 7
  %v919 = vsub.s32 %v818, %v918
  %v920 = vrot.slane %v744, %v919
  %v921 = vsel %vm823, %v920, %v916
  %v922 = vlaneseq
  %v923 = vshrl.u32 %v922, 7
  %v924 = vsub.s32 %v825, %v923
  %v925 = vrot.slane %v747, %v924
  %v926 = vsel %vm830, %v925, %v921
  %v927 = vlaneseq
  %v928 = vshrl.u32 %v927, 7
  %v929 = vsub.s32 %v806, %v928
  %v930 = vrot.slane %v750, %v929
  %v931 = vlaneseq
  %v932 = vshrl.u32 %v931, 7
  %v933 = vsub.s32 %v811, %v932
  %v934 = vrot.slane %v753, %v933
  %v935 = vsel %vm816, %v934, %v930
  %v936 = vlaneseq
  %v937 = vshrl.u32 %v936, 7
  %v938 = vsub.s32 %v818, %v937
  %v939 = vrot.slane %v756, %v938
  %v940 = vsel %vm823, %v939, %v935
  %v941 = vlaneseq
  %v942 = vshrl.u32 %v941, 7
  %v943 = vsub.s32 %v825, %v942
  %v944 = vrot.slane %v759, %v943
  %v945 = vsel %vm830, %v944, %v940
  %v946 = vlaneseq
  %v947 = vshrl.u32 %v946, 7
  %v948 = vsub.s32 %v806, %v947
  %v949 = vrot.slane %v762, %v948
  %v950 = vlaneseq
  %v951 = vshrl.u32 %v950, 7
  %v952 = vsub.s32 %v811, %v951
  %v953 = vrot.slane %v765, %v952
  %v954 = vsel %vm816, %v953, %v949
  %v955 = vlaneseq
  %v956 = vshrl.u32 %v955, 7
  %v957 = vsub.s32 %v818, %v956
  %v958 = vrot.slane %v768, %v957
  %v959 = vsel %vm823, %v958, %v954
  %v960 = vlaneseq
  %v961 = vshrl.u32 %v960, 7
  %v962 = vsub.s32 %v825, %v961
  %v963 = vrot.slane %v771, %v962
  %v964 = vsel %vm830, %v963, %v959
  %vm965 = vcmask 1041409
  %v966 = vsel %vm965, %v850, %v831
  %vm967 = vcmask 1042434
  %v968 = vsel %vm967, %v869, %v966
  %vm969 = vcmask 1043459
  %v970 = vsel %vm969, %v888, %v968
  %vm971 = vcmask 1044484
  %v972 = vsel %vm971, %v907, %v970
  %vm973 = vcmask 1045509
  %v974 = vsel %vm973, %v926, %v972
  %vm975 = vcmask 1046534
  %v976 = vsel %vm975, %v945, %v974
  %vm977 = vcmask 1047559
  %v978 = vsel %vm977, %v964, %v976
  %v980 = vadd.f32 %v772, %v978
  %981 = vst.msk [vmem:[#allocation2] sm:$0xff] %vm258, %v980
  // Predicated region
  $region26: #{iclassifier_forward.1} parent=0 // pred_check
    %p982 = pneg %p20
  $region27: #{iclassifier_forward.1} parent=0 // pred_check_branch
    %984 = sbr.rel (%p982) target = $region29
  $region28: #{iclassifier_forward.1} parent=0 // pred_region
    %v985 = vld [vmem:[#allocation2] sm:$0xff]
    %v986 = vmul.f32 %v985, 0.00390625
    %v987 = vld [vmem:[%s3] sm:$0xff]
    %v988 = vld [vmem:[%s3 + $0x8] sm:$0xff]
    %v989 = vld [vmem:[%s3 + $0x10] sm:$0xff]
    %v990 = vld [vmem:[%s3 + $0x18] sm:$0xff]
    %v991 = vld [vmem:[%s4] sm:$0x1]
    %v993 = vlaneseq
    %v994 = vshrl.u32 %v993, 7
    %v995 = vsub.s32 0, %v994
    %v996 = vrot.slane %v991, %v995
    %v999 = vsel %vm258, %v986, 0
    %1001 = vmatprep.subr.mxu0 0.0
    %1002 = vmatpush1.msra.mxu0 0.0
    %1003 = vmatprep.subr.mxu0 0.0
    %1004 = vmatpush1.msra.mxu0 0.0
    %1005 = vmatprep.subr.mxu0 0.0
    %1006 = vmatpush1.msra.mxu0 0.0
    %1007 = vmatprep.subr.mxu0 0.0
    %1008 = vmatpush1.msra.mxu0 0.0
    %1009 = vmatprep.subr.mxu0 0.0
    %1010 = vmatpush1.msra.mxu0 0.0
    %1011 = vmatprep.subr.mxu0 0.0
    %1012 = vmatpush1.msra.mxu0 0.0
    %1013 = vmatprep.subr.mxu0 0.0
    %1014 = vmatpush1.msra.mxu0 0.0
    %1015 = vmatprep.subr.mxu0 0.0
    %1016 = vmatpush1.msra.mxu0 0.0
    %1017 = vmatprep.subr.mxu0 0.0
    %1018 = vmatpush1.msra.mxu0 0.0
    %1019 = vmatprep.subr.mxu0 0.0
    %1020 = vmatpush1.msra.mxu0 0.0
    %1021 = vmatprep.subr.mxu0 0.0
    %1022 = vmatpush1.msra.mxu0 0.0
    %1023 = vmatprep.subr.mxu0 0.0
    %1024 = vmatpush1.msra.mxu0 0.0
    %1025 = vmatprep.subr.mxu0 0.0
    %1026 = vmatpush1.msra.mxu0 %v990
    %1027 = vmatprep.subr.mxu0 0.0
    %1028 = vmatpush1.msra.mxu0 %v989
    %1029 = vmatprep.subr.mxu0 0.0
    %1030 = vmatpush1.msra.mxu0 %v988
    %1031 = vmatprep.subr.mxu0 0.0
    %1032 = vmatpush1.msra.mxu0 %v987
    %1033 = vmatprep.subr.mxu0 0.0
    %1034 = vmatpush2.msra.mxu0 0.0
    %1035 = vmatprep.subr.mxu0 0.0
    %1036 = vmatpush2.msra.mxu0 0.0
    %1037 = vmatprep.subr.mxu0 0.0
    %1038 = vmatpush2.msra.mxu0 0.0
    %1039 = vmatprep.subr.mxu0 0.0
    %1040 = vmatpush2.msra.mxu0 0.0
    %1041 = vmatprep.subr.mxu0 0.0
    %1042 = vmatpush2.msra.mxu0 0.0
    %1043 = vmatprep.subr.mxu0 0.0
    %1044 = vmatpush2.msra.mxu0 0.0
    %1045 = vmatprep.subr.mxu0 0.0
    %1046 = vmatpush2.msra.mxu0 0.0
    %1047 = vmatprep.subr.mxu0 0.0
    %1048 = vmatpush2.msra.mxu0 0.0
    %1049 = vmatprep.subr.mxu0 0.0
    %1050 = vmatpush2.msra.mxu0 0.0
    %1051 = vmatprep.subr.mxu0 0.0
    %1052 = vmatpush2.msra.mxu0 0.0
    %1053 = vmatprep.subr.mxu0 0.0
    %1054 = vmatpush2.msra.mxu0 0.0
    %1055 = vmatprep.subr.mxu0 0.0
    %1056 = vmatpush2.msra.mxu0 0.0
    %1057 = vmatprep.subr.mxu0 0.0
    %1058 = vmatpush2.msra.mxu0 0.0
    %1059 = vmatprep.subr.mxu0 0.0
    %1060 = vmatpush2.msra.mxu0 0.0
    %1061 = vmatprep.subr.mxu0 0.0
    %1062 = vmatpush2.msra.mxu0 0.0
    %1063 = vmatprep.subr.mxu0 0.0
    %1064 = vmatpush2.msra.mxu0 0.0
    %1065 = vmatprep.mubr.f32.mxu0 0.0
    %1066 = vmatmul.mubr.f32.gmra.mxu0 %v999
    %v1067 = vpop.f32.mrf.mxu0
    %v1068 = vadd.f32 %v996, %v1067
    %v1069 = vpop.f32.mrf.mxu0
    %1070 = vdwg.mxu0
    %1072 = vrot.lane.b32.xlu0 %v1068, 32
    %v1073 = vpop.permute.xlu0 %1072
    %v1075 = vsel %vm258, %v986, %v1073
    %vm1076 = vcmask 326656
    %v1077 = vsel %vm1076, %v1075, 0.0
    %1078 = vst [vmem:[%s5] sm:$0xff] %v1077
  $region29: #{iclassifier_forward.1} parent=0 // pred_fallthru
    _
  // Predicated region
  $region30: #{iclassifier_forward.1} parent=0 // pred_check
    _
  $region31: #{iclassifier_forward.1} parent=0 // pred_check_branch
    %1080 = sbr.rel (0) target = $region33
  $region32: #{iclassifier_forward.1} parent=0 // pred_region
    _
  $region33: #{iclassifier_forward.1} parent=0 // pred_fallthru
    _
  // Predicated region
  $region34: #{iclassifier_forward.1} parent=0 // pred_check
    _
  $region35: #{iclassifier_forward.1} parent=0 // pred_check_branch
    %1082 = sbr.rel (0) target = $region37
  $region36: #{iclassifier_forward.1} parent=0 // pred_region
    _
  $region37: #{iclassifier_forward.1} parent=0 // pred_fallthru
    _

</llo_original>
